<compile_context>
chip_gen: v7x
topology: tpu7x:2x2x1
jax: 0.10.0
libtpu: 0.0.40
codegen_flags: <defaults>
</compile_context>

<pallas_src>
import functools

import numpy as np
import jax
import jax.numpy as jnp
from jax.experimental import pallas as pl
from jax.experimental.pallas import tpu as pltpu


# ----------------------------------------------------------------------------
# Fused RDB kernel (single grid step, whole lane-concatenated batch).
# ----------------------------------------------------------------------------
def _rdb_kernel(x_ref, wc_ref, wl_ref, mask_ref, o_ref, feat_ref, *, W):
    # x_ref    : (N, G0, HW)        input images, channels on sublanes
    # wc_ref   : (C, 9G, Kfeat)     conv weights, rows ordered (ky, kx, g);
    #                               K columns follow the padded feat-row layout,
    #                               bias folded into the `ones` column (center tap)
    # wl_ref   : (G0, Kfeat)        1x1 LFF weights (+ bias column)
    # mask_ref : (8, G, N*HW)       SAME-padding validity masks, non-center taps
    # o_ref    : (N, G0, HW)        output images
    # feat_ref : (Kfeat, N*HW) f32  VMEM scratch: growing dense feature map
    N, G0, HW = x_ref.shape
    C, nine_g, Kfeat = wc_ref.shape
    G = nine_g // 9
    NHW = feat_ref.shape[1]
    G0p = ((G0 + 7) // 8) * 8
    Gp = ((G + 7) // 8) * 8
    bias_row = G0p + C * Gp

    # ---- feature scratch init ----------------------------------------------
    # rows [0, G0)              : input channels (lane-concatenated over batch)
    # rows [G0p + c*Gp, ..+G)   : layer-c output (written in the loop below)
    # row  bias_row             : constant 1.0 (bias column of every matmul)
    # everything else           : zero (matching weight columns are zero too)
    feat_ref[G0p:Kfeat, :] = jnp.zeros((Kfeat - G0p, NHW), jnp.float32)
    if G0p > G0:
        feat_ref[G0:G0p, :] = jnp.zeros((G0p - G0, NHW), jnp.float32)
    feat_ref[bias_row:bias_row + 1, :] = jnp.ones((1, NHW), jnp.float32)
    for n in range(N):                              # lane offsets are x128-aligned
        feat_ref[0:G0, n * HW:(n + 1) * HW] = x_ref[n].astype(jnp.float32)

    # ---- C x (3x3 conv + bias + ReLU), dense connectivity -------------------
    for c in range(C):                              # unrolled at trace time
        # One MXU matmul per layer for all 9 taps (bias rides the ones row).
        z = jnp.dot(wc_ref[c], feat_ref[...],
                    preferred_element_type=jnp.float32)         # (9G, NHW)
        acc = z[4 * G:5 * G, :]                     # center tap (never masked)
        ti = 0
        for ky in range(3):
            for kx in range(3):
                if ky == 1 and kx == 1:
                    continue
                t = ky * 3 + kx
                off = (ky - 1) * W + (kx - 1)
                zt = z[t * G:(t + 1) * G, :]
                # SAME padding: lane rotation on the XLU + precomputed 0/1 mask.
                zt = pltpu.roll(zt, shift=(-off) % NHW, axis=1)
                acc = acc + zt * mask_ref[ti]
                ti += 1
        out = jnp.maximum(acc, 0.0)                 # ReLU
        if Gp > G:                                  # pad to a full 8-row block
            out = jnp.concatenate(
                [out, jnp.zeros((Gp - G, NHW), jnp.float32)], axis=0)
        base = G0p + c * Gp
        feat_ref[base:base + Gp, :] = out           # aligned full-tile store

    # ---- 1x1 LFF (+ bias via ones row) + residual, fused ---------------------
    y = jnp.dot(wl_ref[...], feat_ref[...], preferred_element_type=jnp.float32)
    for n in range(N):
        o_ref[n] = (y[:, n * HW:(n + 1) * HW]
                    + x_ref[n].astype(jnp.float32)).astype(o_ref.dtype)


# ----------------------------------------------------------------------------
# One-time parameter repacking (PyTorch OIHW layout -> kernel layout).
# ----------------------------------------------------------------------------
def pack_rdb_params(conv_ws, conv_bs, lff_w, lff_b, H, W, N):
    conv_ws = [np.asarray(w, np.float32) for w in conv_ws]
    conv_bs = [np.asarray(b, np.float32) for b in conv_bs]
    lff_w = np.asarray(lff_w, np.float32)
    lff_b = np.asarray(lff_b, np.float32)

    C = len(conv_ws)
    G, G0 = conv_ws[0].shape[0], conv_ws[0].shape[1]
    G0p = ((G0 + 7) // 8) * 8
    Gp = ((G + 7) // 8) * 8
    bias_row = G0p + C * Gp
    Kfeat = bias_row + 8                       # ones row + zero pad, multiple of 8

    def feat_row(j):                           # torch concat channel -> feat row
        if j < G0:
            return j
        l, r = divmod(j - G0, G)
        return G0p + l * Gp + r

    wc = np.zeros((C, 9 * G, Kfeat), np.float32)
    for c, (w, b) in enumerate(zip(conv_ws, conv_bs)):
        for j in range(w.shape[1]):
            # rows ordered (ky, kx, g)
            wc[c, :, feat_row(j)] = np.transpose(w[:, j], (1, 2, 0)).reshape(9 * G)
        wc[c, 4 * G:5 * G, bias_row] = b       # bias only on the center tap

    wl = np.zeros((G0, Kfeat), np.float32)
    for j in range(lff_w.shape[1]):
        wl[:, feat_row(j)] = lff_w[:, j]
    wl[:, bias_row] = lff_b

    # Combined row+column SAME-padding masks for the 8 non-center taps, tiled over
    # the lane-concatenated batch and pre-broadcast over the G output channels.
    HW = H * W
    p = np.arange(HW)
    yy, xx = p // W, p % W
    masks = []
    for ky in range(3):
        for kx in range(3):
            if ky == 1 and kx == 1:
                continue
            dy, dx = ky - 1, kx - 1
            valid = ((yy + dy >= 0) & (yy + dy < H)
                     & (xx + dx >= 0) & (xx + dx < W)).astype(np.float32)
            masks.append(np.tile(valid, N))
    mask = np.broadcast_to(np.stack(masks)[:, None, :], (8, G, N * HW)).copy()

    return jnp.asarray(wc), jnp.asarray(wl), jnp.asarray(mask)


# ----------------------------------------------------------------------------
# Fused forward pass (NCHW in, NCHW out).  No wrapper transposes needed.
# ----------------------------------------------------------------------------
@jax.jit
def rdb_forward(x_nchw, wc, wl, mask):
    N, G0, H, W = x_nchw.shape
    HW = H * W
    C, nine_g, Kfeat = wc.shape
    G = nine_g // 9
    NHW = N * HW

    out = pl.pallas_call(
        functools.partial(_rdb_kernel, W=W),
        out_shape=jax.ShapeDtypeStruct((N, G0, HW), x_nchw.dtype),
        grid=(1,),
        in_specs=[
            pl.BlockSpec((N, G0, HW), lambda i: (0, 0, 0)),        # x (whole batch)
            pl.BlockSpec((C, nine_g, Kfeat), lambda i: (0, 0, 0)),  # conv weights
            pl.BlockSpec((G0, Kfeat), lambda i: (0, 0)),            # LFF weights
            pl.BlockSpec((8, G, NHW), lambda i: (0, 0, 0)),         # tap masks
        ],
        out_specs=pl.BlockSpec((N, G0, HW), lambda i: (0, 0, 0)),
        scratch_shapes=[
            pltpu.VMEM((Kfeat, NHW), jnp.float32),                  # feature map
        ],
        compiler_params=pltpu.CompilerParams(
            dimension_semantics=("arbitrary",)),
    )(x_nchw.reshape(N, G0, HW), wc, wl, mask)
    return out.reshape(N, G0, H, W)


# ----------------------------------------------------------------------------
# Pure-JAX reference (lax.conv, NCHW/OIHW) for a correctness sanity check.
# ----------------------------------------------------------------------------
def rdb_reference(x_nchw, conv_ws, conv_bs, lff_w, lff_b):
    dn = ("NCHW", "OIHW", "NCHW")
    feat = x_nchw
    for w, b in zip(conv_ws, conv_bs):
        out = jax.lax.conv_general_dilated(
            feat, w, (1, 1), "SAME", dimension_numbers=dn,
            precision=jax.lax.Precision.HIGHEST)
        out = jnp.maximum(out + b.reshape(1, -1, 1, 1), 0.0)
        feat = jnp.concatenate([feat, out], axis=1)
    y = jax.lax.conv_general_dilated(
        feat, lff_w.reshape(*lff_w.shape, 1, 1), (1, 1), "SAME",
        dimension_numbers=dn, precision=jax.lax.Precision.HIGHEST)
    return y + lff_b.reshape(1, -1, 1, 1) + x_nchw


def init_params(key, G0, G, C):
    conv_ws, conv_bs = [], []
    for c in range(C):
        cin = G0 + c * G
        key, kw, kb = jax.random.split(key, 3)
        conv_ws.append(0.1 * jax.random.normal(kw, (G, cin, 3, 3), jnp.float32))
        conv_bs.append(0.1 * jax.random.normal(kb, (G,), jnp.float32))
    key, kw, kb = jax.random.split(key, 3)
    ctot = G0 + C * G
    lff_w = 0.1 * jax.random.normal(kw, (G0, ctot), jnp.float32)
    lff_b = 0.1 * jax.random.normal(kb, (G0,), jnp.float32)
    return conv_ws, conv_bs, lff_w, lff_b


if __name__ == "__main__":
    # RDB(growRate0=8, growRate=4, nConvLayers=3), input NCHW = (2, 8, 16, 16)
    G0, G, C = 8, 4, 3
    N, H, W = 2, 16, 16

    key = jax.random.PRNGKey(0)
    key, kx = jax.random.split(key)
    x = jax.random.normal(kx, (N, G0, H, W), jnp.float32)
    conv_ws, conv_bs, lff_w, lff_b = init_params(key, G0, G, C)

    packed = pack_rdb_params(conv_ws, conv_bs, lff_w, lff_b, H, W, N)  # off hot path
    out = rdb_forward(x, *packed)
    out = jax.block_until_ready(out)

    ref = rdb_reference(x, conv_ws, conv_bs, lff_w, lff_b)
    assert out.shape == (N, G0, H, W), out.shape
    err = float(jnp.max(jnp.abs(out - ref)))
    assert err < 1e-3, err

    print("KERNEL_OK")
</pallas_src>

<mosaic_0001>
module attributes {stable_mosaic.version = 11 : i64} {
  func.func @_rdb_kernel(%arg0: i32, %arg1: memref<2x8x256xf32, #tpu.memory_space<vmem>>, %arg2: memref<3x36x40xf32, #tpu.memory_space<vmem>>, %arg3: memref<8x40xf32, #tpu.memory_space<vmem>>, %arg4: memref<8x4x512xf32, #tpu.memory_space<vmem>>, %arg5: memref<2x8x256xf32, #tpu.memory_space<vmem>>, %arg6: memref<40x512xf32, #tpu.memory_space<vmem>>) attributes {dimension_semantics = [#tpu.dimension_semantics<arbitrary>], iteration_bounds = array<i64: 1>, scalar_prefetch = 0 : i64, scratch_operands = 1 : i64, tpu.core_type = #tpu.core_type<tc>, window_params = [{pipeline_mode = #tpu.pipeline_mode<synchronous>, transform_indices = @transform_0, window_bounds = array<i64: 2, 8, 256>}, {pipeline_mode = #tpu.pipeline_mode<synchronous>, transform_indices = @transform_1, window_bounds = array<i64: 3, 36, 40>}, {pipeline_mode = #tpu.pipeline_mode<synchronous>, transform_indices = @transform_2, window_bounds = array<i64: 8, 40>}, {pipeline_mode = #tpu.pipeline_mode<synchronous>, transform_indices = @transform_3, window_bounds = array<i64: 8, 4, 512>}, {pipeline_mode = #tpu.pipeline_mode<synchronous>, transform_indices = @transform_4, window_bounds = array<i64: 2, 8, 256>}]} {
    %cst = arith.constant 0.000000e+00 : f32
    %0 = vector.broadcast %cst : f32 to vector<32x512xf32>
    %c8 = arith.constant 8 : index
    %c0 = arith.constant 0 : index
    %1 = vector.load %arg6[%c8, %c0] : memref<40x512xf32, #tpu.memory_space<vmem>>, vector<32x512xf32>
    tpu.vector_store %arg6[%c8, %c0], %0 {strides = array<i32>} : memref<40x512xf32, #tpu.memory_space<vmem>>, vector<32x512xf32>,
    %cst_0 = arith.constant 1.000000e+00 : f32
    %2 = vector.broadcast %cst_0 : f32 to vector<1x512xf32>
    %c32 = arith.constant 32 : index
    %c0_1 = arith.constant 0 : index
    %3 = vector.load %arg6[%c32, %c0_1] : memref<40x512xf32, #tpu.memory_space<vmem>>, vector<1x512xf32>
    tpu.vector_store %arg6[%c32, %c0_1], %2 {strides = array<i32>} : memref<40x512xf32, #tpu.memory_space<vmem>>, vector<1x512xf32>,
    %c0_2 = arith.constant 0 : index
    %c0_3 = arith.constant 0 : index
    %c0_4 = arith.constant 0 : index
    %4 = vector.load %arg1[%c0_2, %c0_3, %c0_4] : memref<2x8x256xf32, #tpu.memory_space<vmem>>, vector<1x8x256xf32>
    %5 = vector.shape_cast %4 : vector<1x8x256xf32> to vector<8x256xf32>
    %c0_5 = arith.constant 0 : index
    %c0_6 = arith.constant 0 : index
    %6 = vector.load %arg6[%c0_5, %c0_6] : memref<40x512xf32, #tpu.memory_space<vmem>>, vector<8x256xf32>
    tpu.vector_store %arg6[%c0_5, %c0_6], %5 {strides = array<i32>} : memref<40x512xf32, #tpu.memory_space<vmem>>, vector<8x256xf32>,
    %c1 = arith.constant 1 : index
    %c0_7 = arith.constant 0 : index
    %c0_8 = arith.constant 0 : index
    %7 = vector.load %arg1[%c1, %c0_7, %c0_8] : memref<2x8x256xf32, #tpu.memory_space<vmem>>, vector<1x8x256xf32>
    %8 = vector.shape_cast %7 : vector<1x8x256xf32> to vector<8x256xf32>
    %c0_9 = arith.constant 0 : index
    %c256 = arith.constant 256 : index
    %9 = vector.load %arg6[%c0_9, %c256] : memref<40x512xf32, #tpu.memory_space<vmem>>, vector<8x256xf32>
    tpu.vector_store %arg6[%c0_9, %c256], %8 {strides = array<i32>} : memref<40x512xf32, #tpu.memory_space<vmem>>, vector<8x256xf32>,
    %c0_10 = arith.constant 0 : index
    %c0_11 = arith.constant 0 : index
    %c0_12 = arith.constant 0 : index
    %10 = vector.load %arg2[%c0_10, %c0_11, %c0_12] : memref<3x36x40xf32, #tpu.memory_space<vmem>>, vector<1x36x40xf32>
    %11 = vector.shape_cast %10 : vector<1x36x40xf32> to vector<36x40xf32>
    %c0_13 = arith.constant 0 : index
    %c0_14 = arith.constant 0 : index
    %12 = vector.load %arg6[%c0_13, %c0_14] : memref<40x512xf32, #tpu.memory_space<vmem>>, vector<40x512xf32>
    %cst_15 = arith.constant dense<0.000000e+00> : vector<36x512xf32>
    %13 = tpu.matmul %11, %12, %cst_15 {dimension_numbers = #tpu.dot_dimension_numbers<[1], [0], [0], [1], [0, 0, 1, 1], [], []>} : vector<36x40xf32>, vector<40x512xf32>, vector<36x512xf32> -> vector<36x512xf32>
    %14 = vector.extract_strided_slice %13 {offsets = [16, 0], sizes = [4, 512], strides = [1, 1]} : vector<36x512xf32> to vector<4x512xf32>
    %15 = vector.extract_strided_slice %13 {offsets = [0, 0], sizes = [4, 512], strides = [1, 1]} : vector<36x512xf32> to vector<4x512xf32>
    %c17_i32 = arith.constant 17 : i32
    %16 = tpu.dynamic_rotate %15 by %c17_i32 dim 1 : vector<4x512xf32>, i32 -> vector<4x512xf32>
    %c0_16 = arith.constant 0 : index
    %c0_17 = arith.constant 0 : index
    %c0_18 = arith.constant 0 : index
    %17 = vector.load %arg4[%c0_16, %c0_17, %c0_18] : memref<8x4x512xf32, #tpu.memory_space<vmem>>, vector<1x4x512xf32>
    %18 = vector.shape_cast %17 : vector<1x4x512xf32> to vector<4x512xf32>
    %19 = arith.mulf %16, %18 : vector<4x512xf32>
    %20 = arith.addf %14, %19 : vector<4x512xf32>
    %21 = vector.extract_strided_slice %13 {offsets = [4, 0], sizes = [4, 512], strides = [1, 1]} : vector<36x512xf32> to vector<4x512xf32>
    %c16_i32 = arith.constant 16 : i32
    %22 = tpu.dynamic_rotate %21 by %c16_i32 dim 1 : vector<4x512xf32>, i32 -> vector<4x512xf32>
    %c1_19 = arith.constant 1 : index
    %c0_20 = arith.constant 0 : index
    %c0_21 = arith.constant 0 : index
    %23 = vector.load %arg4[%c1_19, %c0_20, %c0_21] : memref<8x4x512xf32, #tpu.memory_space<vmem>>, vector<1x4x512xf32>
    %24 = vector.shape_cast %23 : vector<1x4x512xf32> to vector<4x512xf32>
    %25 = arith.mulf %22, %24 : vector<4x512xf32>
    %26 = arith.addf %20, %25 : vector<4x512xf32>
    %27 = vector.extract_strided_slice %13 {offsets = [8, 0], sizes = [4, 512], strides = [1, 1]} : vector<36x512xf32> to vector<4x512xf32>
    %c15_i32 = arith.constant 15 : i32
    %28 = tpu.dynamic_rotate %27 by %c15_i32 dim 1 : vector<4x512xf32>, i32 -> vector<4x512xf32>
    %c2 = arith.constant 2 : index
    %c0_22 = arith.constant 0 : index
    %c0_23 = arith.constant 0 : index
    %29 = vector.load %arg4[%c2, %c0_22, %c0_23] : memref<8x4x512xf32, #tpu.memory_space<vmem>>, vector<1x4x512xf32>
    %30 = vector.shape_cast %29 : vector<1x4x512xf32> to vector<4x512xf32>
    %31 = arith.mulf %28, %30 : vector<4x512xf32>
    %32 = arith.addf %26, %31 : vector<4x512xf32>
    %33 = vector.extract_strided_slice %13 {offsets = [12, 0], sizes = [4, 512], strides = [1, 1]} : vector<36x512xf32> to vector<4x512xf32>
    %c1_i32 = arith.constant 1 : i32
    %34 = tpu.dynamic_rotate %33 by %c1_i32 dim 1 : vector<4x512xf32>, i32 -> vector<4x512xf32>
    %c3 = arith.constant 3 : index
    %c0_24 = arith.constant 0 : index
    %c0_25 = arith.constant 0 : index
    %35 = vector.load %arg4[%c3, %c0_24, %c0_25] : memref<8x4x512xf32, #tpu.memory_space<vmem>>, vector<1x4x512xf32>
    %36 = vector.shape_cast %35 : vector<1x4x512xf32> to vector<4x512xf32>
    %37 = arith.mulf %34, %36 : vector<4x512xf32>
    %38 = arith.addf %32, %37 : vector<4x512xf32>
    %39 = vector.extract_strided_slice %13 {offsets = [20, 0], sizes = [4, 512], strides = [1, 1]} : vector<36x512xf32> to vector<4x512xf32>
    %c511_i32 = arith.constant 511 : i32
    %40 = tpu.dynamic_rotate %39 by %c511_i32 dim 1 : vector<4x512xf32>, i32 -> vector<4x512xf32>
    %c4 = arith.constant 4 : index
    %c0_26 = arith.constant 0 : index
    %c0_27 = arith.constant 0 : index
    %41 = vector.load %arg4[%c4, %c0_26, %c0_27] : memref<8x4x512xf32, #tpu.memory_space<vmem>>, vector<1x4x512xf32>
    %42 = vector.shape_cast %41 : vector<1x4x512xf32> to vector<4x512xf32>
    %43 = arith.mulf %40, %42 : vector<4x512xf32>
    %44 = arith.addf %38, %43 : vector<4x512xf32>
    %45 = vector.extract_strided_slice %13 {offsets = [24, 0], sizes = [4, 512], strides = [1, 1]} : vector<36x512xf32> to vector<4x512xf32>
    %c497_i32 = arith.constant 497 : i32
    %46 = tpu.dynamic_rotate %45 by %c497_i32 dim 1 : vector<4x512xf32>, i32 -> vector<4x512xf32>
    %c5 = arith.constant 5 : index
    %c0_28 = arith.constant 0 : index
    %c0_29 = arith.constant 0 : index
    %47 = vector.load %arg4[%c5, %c0_28, %c0_29] : memref<8x4x512xf32, #tpu.memory_space<vmem>>, vector<1x4x512xf32>
    %48 = vector.shape_cast %47 : vector<1x4x512xf32> to vector<4x512xf32>
    %49 = arith.mulf %46, %48 : vector<4x512xf32>
    %50 = arith.addf %44, %49 : vector<4x512xf32>
    %51 = vector.extract_strided_slice %13 {offsets = [28, 0], sizes = [4, 512], strides = [1, 1]} : vector<36x512xf32> to vector<4x512xf32>
    %c496_i32 = arith.constant 496 : i32
    %52 = tpu.dynamic_rotate %51 by %c496_i32 dim 1 : vector<4x512xf32>, i32 -> vector<4x512xf32>
    %c6 = arith.constant 6 : index
    %c0_30 = arith.constant 0 : index
    %c0_31 = arith.constant 0 : index
    %53 = vector.load %arg4[%c6, %c0_30, %c0_31] : memref<8x4x512xf32, #tpu.memory_space<vmem>>, vector<1x4x512xf32>
    %54 = vector.shape_cast %53 : vector<1x4x512xf32> to vector<4x512xf32>
    %55 = arith.mulf %52, %54 : vector<4x512xf32>
    %56 = arith.addf %50, %55 : vector<4x512xf32>
    %57 = vector.extract_strided_slice %13 {offsets = [32, 0], sizes = [4, 512], strides = [1, 1]} : vector<36x512xf32> to vector<4x512xf32>
    %c495_i32 = arith.constant 495 : i32
    %58 = tpu.dynamic_rotate %57 by %c495_i32 dim 1 : vector<4x512xf32>, i32 -> vector<4x512xf32>
    %c7 = arith.constant 7 : index
    %c0_32 = arith.constant 0 : index
    %c0_33 = arith.constant 0 : index
    %59 = vector.load %arg4[%c7, %c0_32, %c0_33] : memref<8x4x512xf32, #tpu.memory_space<vmem>>, vector<1x4x512xf32>
    %60 = vector.shape_cast %59 : vector<1x4x512xf32> to vector<4x512xf32>
    %61 = arith.mulf %58, %60 : vector<4x512xf32>
    %62 = arith.addf %56, %61 : vector<4x512xf32>
    %cst_34 = arith.constant 0.000000e+00 : f32
    %63 = vector.broadcast %cst_34 : f32 to vector<4x512xf32>
    %64 = arith.maximumf %62, %63 : vector<4x512xf32>
    %cst_35 = arith.constant 0.000000e+00 : f32
    %65 = vector.broadcast %cst_35 : f32 to vector<4x512xf32>
    %66 = tpu.concatenate %64, %65 in 0 : vector<4x512xf32>, vector<4x512xf32> -> vector<8x512xf32>
    %c8_36 = arith.constant 8 : index
    %c0_37 = arith.constant 0 : index
    %67 = vector.load %arg6[%c8_36, %c0_37] : memref<40x512xf32, #tpu.memory_space<vmem>>, vector<8x512xf32>
    tpu.vector_store %arg6[%c8_36, %c0_37], %66 {strides = array<i32>} : memref<40x512xf32, #tpu.memory_space<vmem>>, vector<8x512xf32>,
    %c1_38 = arith.constant 1 : index
    %c0_39 = arith.constant 0 : index
    %c0_40 = arith.constant 0 : index
    %68 = vector.load %arg2[%c1_38, %c0_39, %c0_40] : memref<3x36x40xf32, #tpu.memory_space<vmem>>, vector<1x36x40xf32>
    %69 = vector.shape_cast %68 : vector<1x36x40xf32> to vector<36x40xf32>
    %c0_41 = arith.constant 0 : index
    %c0_42 = arith.constant 0 : index
    %70 = vector.load %arg6[%c0_41, %c0_42] : memref<40x512xf32, #tpu.memory_space<vmem>>, vector<40x512xf32>
    %cst_43 = arith.constant dense<0.000000e+00> : vector<36x512xf32>
    %71 = tpu.matmul %69, %70, %cst_43 {dimension_numbers = #tpu.dot_dimension_numbers<[1], [0], [0], [1], [0, 0, 1, 1], [], []>} : vector<36x40xf32>, vector<40x512xf32>, vector<36x512xf32> -> vector<36x512xf32>
    %72 = vector.extract_strided_slice %71 {offsets = [16, 0], sizes = [4, 512], strides = [1, 1]} : vector<36x512xf32> to vector<4x512xf32>
    %73 = vector.extract_strided_slice %71 {offsets = [0, 0], sizes = [4, 512], strides = [1, 1]} : vector<36x512xf32> to vector<4x512xf32>
    %c17_i32_44 = arith.constant 17 : i32
    %74 = tpu.dynamic_rotate %73 by %c17_i32_44 dim 1 : vector<4x512xf32>, i32 -> vector<4x512xf32>
    %c0_45 = arith.constant 0 : index
    %c0_46 = arith.constant 0 : index
    %c0_47 = arith.constant 0 : index
    %75 = vector.load %arg4[%c0_45, %c0_46, %c0_47] : memref<8x4x512xf32, #tpu.memory_space<vmem>>, vector<1x4x512xf32>
    %76 = vector.shape_cast %75 : vector<1x4x512xf32> to vector<4x512xf32>
    %77 = arith.mulf %74, %76 : vector<4x512xf32>
    %78 = arith.addf %72, %77 : vector<4x512xf32>
    %79 = vector.extract_strided_slice %71 {offsets = [4, 0], sizes = [4, 512], strides = [1, 1]} : vector<36x512xf32> to vector<4x512xf32>
    %c16_i32_48 = arith.constant 16 : i32
    %80 = tpu.dynamic_rotate %79 by %c16_i32_48 dim 1 : vector<4x512xf32>, i32 -> vector<4x512xf32>
    %c1_49 = arith.constant 1 : index
    %c0_50 = arith.constant 0 : index
    %c0_51 = arith.constant 0 : index
    %81 = vector.load %arg4[%c1_49, %c0_50, %c0_51] : memref<8x4x512xf32, #tpu.memory_space<vmem>>, vector<1x4x512xf32>
    %82 = vector.shape_cast %81 : vector<1x4x512xf32> to vector<4x512xf32>
    %83 = arith.mulf %80, %82 : vector<4x512xf32>
    %84 = arith.addf %78, %83 : vector<4x512xf32>
    %85 = vector.extract_strided_slice %71 {offsets = [8, 0], sizes = [4, 512], strides = [1, 1]} : vector<36x512xf32> to vector<4x512xf32>
    %c15_i32_52 = arith.constant 15 : i32
    %86 = tpu.dynamic_rotate %85 by %c15_i32_52 dim 1 : vector<4x512xf32>, i32 -> vector<4x512xf32>
    %c2_53 = arith.constant 2 : index
    %c0_54 = arith.constant 0 : index
    %c0_55 = arith.constant 0 : index
    %87 = vector.load %arg4[%c2_53, %c0_54, %c0_55] : memref<8x4x512xf32, #tpu.memory_space<vmem>>, vector<1x4x512xf32>
    %88 = vector.shape_cast %87 : vector<1x4x512xf32> to vector<4x512xf32>
    %89 = arith.mulf %86, %88 : vector<4x512xf32>
    %90 = arith.addf %84, %89 : vector<4x512xf32>
    %91 = vector.extract_strided_slice %71 {offsets = [12, 0], sizes = [4, 512], strides = [1, 1]} : vector<36x512xf32> to vector<4x512xf32>
    %c1_i32_56 = arith.constant 1 : i32
    %92 = tpu.dynamic_rotate %91 by %c1_i32_56 dim 1 : vector<4x512xf32>, i32 -> vector<4x512xf32>
    %c3_57 = arith.constant 3 : index
    %c0_58 = arith.constant 0 : index
    %c0_59 = arith.constant 0 : index
    %93 = vector.load %arg4[%c3_57, %c0_58, %c0_59] : memref<8x4x512xf32, #tpu.memory_space<vmem>>, vector<1x4x512xf32>
    %94 = vector.shape_cast %93 : vector<1x4x512xf32> to vector<4x512xf32>
    %95 = arith.mulf %92, %94 : vector<4x512xf32>
    %96 = arith.addf %90, %95 : vector<4x512xf32>
    %97 = vector.extract_strided_slice %71 {offsets = [20, 0], sizes = [4, 512], strides = [1, 1]} : vector<36x512xf32> to vector<4x512xf32>
    %c511_i32_60 = arith.constant 511 : i32
    %98 = tpu.dynamic_rotate %97 by %c511_i32_60 dim 1 : vector<4x512xf32>, i32 -> vector<4x512xf32>
    %c4_61 = arith.constant 4 : index
    %c0_62 = arith.constant 0 : index
    %c0_63 = arith.constant 0 : index
    %99 = vector.load %arg4[%c4_61, %c0_62, %c0_63] : memref<8x4x512xf32, #tpu.memory_space<vmem>>, vector<1x4x512xf32>
    %100 = vector.shape_cast %99 : vector<1x4x512xf32> to vector<4x512xf32>
    %101 = arith.mulf %98, %100 : vector<4x512xf32>
    %102 = arith.addf %96, %101 : vector<4x512xf32>
    %103 = vector.extract_strided_slice %71 {offsets = [24, 0], sizes = [4, 512], strides = [1, 1]} : vector<36x512xf32> to vector<4x512xf32>
    %c497_i32_64 = arith.constant 497 : i32
    %104 = tpu.dynamic_rotate %103 by %c497_i32_64 dim 1 : vector<4x512xf32>, i32 -> vector<4x512xf32>
    %c5_65 = arith.constant 5 : index
    %c0_66 = arith.constant 0 : index
    %c0_67 = arith.constant 0 : index
    %105 = vector.load %arg4[%c5_65, %c0_66, %c0_67] : memref<8x4x512xf32, #tpu.memory_space<vmem>>, vector<1x4x512xf32>
    %106 = vector.shape_cast %105 : vector<1x4x512xf32> to vector<4x512xf32>
    %107 = arith.mulf %104, %106 : vector<4x512xf32>
    %108 = arith.addf %102, %107 : vector<4x512xf32>
    %109 = vector.extract_strided_slice %71 {offsets = [28, 0], sizes = [4, 512], strides = [1, 1]} : vector<36x512xf32> to vector<4x512xf32>
    %c496_i32_68 = arith.constant 496 : i32
    %110 = tpu.dynamic_rotate %109 by %c496_i32_68 dim 1 : vector<4x512xf32>, i32 -> vector<4x512xf32>
    %c6_69 = arith.constant 6 : index
    %c0_70 = arith.constant 0 : index
    %c0_71 = arith.constant 0 : index
    %111 = vector.load %arg4[%c6_69, %c0_70, %c0_71] : memref<8x4x512xf32, #tpu.memory_space<vmem>>, vector<1x4x512xf32>
    %112 = vector.shape_cast %111 : vector<1x4x512xf32> to vector<4x512xf32>
    %113 = arith.mulf %110, %112 : vector<4x512xf32>
    %114 = arith.addf %108, %113 : vector<4x512xf32>
    %115 = vector.extract_strided_slice %71 {offsets = [32, 0], sizes = [4, 512], strides = [1, 1]} : vector<36x512xf32> to vector<4x512xf32>
    %c495_i32_72 = arith.constant 495 : i32
    %116 = tpu.dynamic_rotate %115 by %c495_i32_72 dim 1 : vector<4x512xf32>, i32 -> vector<4x512xf32>
    %c7_73 = arith.constant 7 : index
    %c0_74 = arith.constant 0 : index
    %c0_75 = arith.constant 0 : index
    %117 = vector.load %arg4[%c7_73, %c0_74, %c0_75] : memref<8x4x512xf32, #tpu.memory_space<vmem>>, vector<1x4x512xf32>
    %118 = vector.shape_cast %117 : vector<1x4x512xf32> to vector<4x512xf32>
    %119 = arith.mulf %116, %118 : vector<4x512xf32>
    %120 = arith.addf %114, %119 : vector<4x512xf32>
    %cst_76 = arith.constant 0.000000e+00 : f32
    %121 = vector.broadcast %cst_76 : f32 to vector<4x512xf32>
    %122 = arith.maximumf %120, %121 : vector<4x512xf32>
    %cst_77 = arith.constant 0.000000e+00 : f32
    %123 = vector.broadcast %cst_77 : f32 to vector<4x512xf32>
    %124 = tpu.concatenate %122, %123 in 0 : vector<4x512xf32>, vector<4x512xf32> -> vector<8x512xf32>
    %c16 = arith.constant 16 : index
    %c0_78 = arith.constant 0 : index
    %125 = vector.load %arg6[%c16, %c0_78] : memref<40x512xf32, #tpu.memory_space<vmem>>, vector<8x512xf32>
    tpu.vector_store %arg6[%c16, %c0_78], %124 {strides = array<i32>} : memref<40x512xf32, #tpu.memory_space<vmem>>, vector<8x512xf32>,
    %c2_79 = arith.constant 2 : index
    %c0_80 = arith.constant 0 : index
    %c0_81 = arith.constant 0 : index
    %126 = vector.load %arg2[%c2_79, %c0_80, %c0_81] : memref<3x36x40xf32, #tpu.memory_space<vmem>>, vector<1x36x40xf32>
    %127 = vector.shape_cast %126 : vector<1x36x40xf32> to vector<36x40xf32>
    %c0_82 = arith.constant 0 : index
    %c0_83 = arith.constant 0 : index
    %128 = vector.load %arg6[%c0_82, %c0_83] : memref<40x512xf32, #tpu.memory_space<vmem>>, vector<40x512xf32>
    %cst_84 = arith.constant dense<0.000000e+00> : vector<36x512xf32>
    %129 = tpu.matmul %127, %128, %cst_84 {dimension_numbers = #tpu.dot_dimension_numbers<[1], [0], [0], [1], [0, 0, 1, 1], [], []>} : vector<36x40xf32>, vector<40x512xf32>, vector<36x512xf32> -> vector<36x512xf32>
    %130 = vector.extract_strided_slice %129 {offsets = [16, 0], sizes = [4, 512], strides = [1, 1]} : vector<36x512xf32> to vector<4x512xf32>
    %131 = vector.extract_strided_slice %129 {offsets = [0, 0], sizes = [4, 512], strides = [1, 1]} : vector<36x512xf32> to vector<4x512xf32>
    %c17_i32_85 = arith.constant 17 : i32
    %132 = tpu.dynamic_rotate %131 by %c17_i32_85 dim 1 : vector<4x512xf32>, i32 -> vector<4x512xf32>
    %c0_86 = arith.constant 0 : index
    %c0_87 = arith.constant 0 : index
    %c0_88 = arith.constant 0 : index
    %133 = vector.load %arg4[%c0_86, %c0_87, %c0_88] : memref<8x4x512xf32, #tpu.memory_space<vmem>>, vector<1x4x512xf32>
    %134 = vector.shape_cast %133 : vector<1x4x512xf32> to vector<4x512xf32>
    %135 = arith.mulf %132, %134 : vector<4x512xf32>
    %136 = arith.addf %130, %135 : vector<4x512xf32>
    %137 = vector.extract_strided_slice %129 {offsets = [4, 0], sizes = [4, 512], strides = [1, 1]} : vector<36x512xf32> to vector<4x512xf32>
    %c16_i32_89 = arith.constant 16 : i32
    %138 = tpu.dynamic_rotate %137 by %c16_i32_89 dim 1 : vector<4x512xf32>, i32 -> vector<4x512xf32>
    %c1_90 = arith.constant 1 : index
    %c0_91 = arith.constant 0 : index
    %c0_92 = arith.constant 0 : index
    %139 = vector.load %arg4[%c1_90, %c0_91, %c0_92] : memref<8x4x512xf32, #tpu.memory_space<vmem>>, vector<1x4x512xf32>
    %140 = vector.shape_cast %139 : vector<1x4x512xf32> to vector<4x512xf32>
    %141 = arith.mulf %138, %140 : vector<4x512xf32>
    %142 = arith.addf %136, %141 : vector<4x512xf32>
    %143 = vector.extract_strided_slice %129 {offsets = [8, 0], sizes = [4, 512], strides = [1, 1]} : vector<36x512xf32> to vector<4x512xf32>
    %c15_i32_93 = arith.constant 15 : i32
    %144 = tpu.dynamic_rotate %143 by %c15_i32_93 dim 1 : vector<4x512xf32>, i32 -> vector<4x512xf32>
    %c2_94 = arith.constant 2 : index
    %c0_95 = arith.constant 0 : index
    %c0_96 = arith.constant 0 : index
    %145 = vector.load %arg4[%c2_94, %c0_95, %c0_96] : memref<8x4x512xf32, #tpu.memory_space<vmem>>, vector<1x4x512xf32>
    %146 = vector.shape_cast %145 : vector<1x4x512xf32> to vector<4x512xf32>
    %147 = arith.mulf %144, %146 : vector<4x512xf32>
    %148 = arith.addf %142, %147 : vector<4x512xf32>
    %149 = vector.extract_strided_slice %129 {offsets = [12, 0], sizes = [4, 512], strides = [1, 1]} : vector<36x512xf32> to vector<4x512xf32>
    %c1_i32_97 = arith.constant 1 : i32
    %150 = tpu.dynamic_rotate %149 by %c1_i32_97 dim 1 : vector<4x512xf32>, i32 -> vector<4x512xf32>
    %c3_98 = arith.constant 3 : index
    %c0_99 = arith.constant 0 : index
    %c0_100 = arith.constant 0 : index
    %151 = vector.load %arg4[%c3_98, %c0_99, %c0_100] : memref<8x4x512xf32, #tpu.memory_space<vmem>>, vector<1x4x512xf32>
    %152 = vector.shape_cast %151 : vector<1x4x512xf32> to vector<4x512xf32>
    %153 = arith.mulf %150, %152 : vector<4x512xf32>
    %154 = arith.addf %148, %153 : vector<4x512xf32>
    %155 = vector.extract_strided_slice %129 {offsets = [20, 0], sizes = [4, 512], strides = [1, 1]} : vector<36x512xf32> to vector<4x512xf32>
    %c511_i32_101 = arith.constant 511 : i32
    %156 = tpu.dynamic_rotate %155 by %c511_i32_101 dim 1 : vector<4x512xf32>, i32 -> vector<4x512xf32>
    %c4_102 = arith.constant 4 : index
    %c0_103 = arith.constant 0 : index
    %c0_104 = arith.constant 0 : index
    %157 = vector.load %arg4[%c4_102, %c0_103, %c0_104] : memref<8x4x512xf32, #tpu.memory_space<vmem>>, vector<1x4x512xf32>
    %158 = vector.shape_cast %157 : vector<1x4x512xf32> to vector<4x512xf32>
    %159 = arith.mulf %156, %158 : vector<4x512xf32>
    %160 = arith.addf %154, %159 : vector<4x512xf32>
    %161 = vector.extract_strided_slice %129 {offsets = [24, 0], sizes = [4, 512], strides = [1, 1]} : vector<36x512xf32> to vector<4x512xf32>
    %c497_i32_105 = arith.constant 497 : i32
    %162 = tpu.dynamic_rotate %161 by %c497_i32_105 dim 1 : vector<4x512xf32>, i32 -> vector<4x512xf32>
    %c5_106 = arith.constant 5 : index
    %c0_107 = arith.constant 0 : index
    %c0_108 = arith.constant 0 : index
    %163 = vector.load %arg4[%c5_106, %c0_107, %c0_108] : memref<8x4x512xf32, #tpu.memory_space<vmem>>, vector<1x4x512xf32>
    %164 = vector.shape_cast %163 : vector<1x4x512xf32> to vector<4x512xf32>
    %165 = arith.mulf %162, %164 : vector<4x512xf32>
    %166 = arith.addf %160, %165 : vector<4x512xf32>
    %167 = vector.extract_strided_slice %129 {offsets = [28, 0], sizes = [4, 512], strides = [1, 1]} : vector<36x512xf32> to vector<4x512xf32>
    %c496_i32_109 = arith.constant 496 : i32
    %168 = tpu.dynamic_rotate %167 by %c496_i32_109 dim 1 : vector<4x512xf32>, i32 -> vector<4x512xf32>
    %c6_110 = arith.constant 6 : index
    %c0_111 = arith.constant 0 : index
    %c0_112 = arith.constant 0 : index
    %169 = vector.load %arg4[%c6_110, %c0_111, %c0_112] : memref<8x4x512xf32, #tpu.memory_space<vmem>>, vector<1x4x512xf32>
    %170 = vector.shape_cast %169 : vector<1x4x512xf32> to vector<4x512xf32>
    %171 = arith.mulf %168, %170 : vector<4x512xf32>
    %172 = arith.addf %166, %171 : vector<4x512xf32>
    %173 = vector.extract_strided_slice %129 {offsets = [32, 0], sizes = [4, 512], strides = [1, 1]} : vector<36x512xf32> to vector<4x512xf32>
    %c495_i32_113 = arith.constant 495 : i32
    %174 = tpu.dynamic_rotate %173 by %c495_i32_113 dim 1 : vector<4x512xf32>, i32 -> vector<4x512xf32>
    %c7_114 = arith.constant 7 : index
    %c0_115 = arith.constant 0 : index
    %c0_116 = arith.constant 0 : index
    %175 = vector.load %arg4[%c7_114, %c0_115, %c0_116] : memref<8x4x512xf32, #tpu.memory_space<vmem>>, vector<1x4x512xf32>
    %176 = vector.shape_cast %175 : vector<1x4x512xf32> to vector<4x512xf32>
    %177 = arith.mulf %174, %176 : vector<4x512xf32>
    %178 = arith.addf %172, %177 : vector<4x512xf32>
    %cst_117 = arith.constant 0.000000e+00 : f32
    %179 = vector.broadcast %cst_117 : f32 to vector<4x512xf32>
    %180 = arith.maximumf %178, %179 : vector<4x512xf32>
    %cst_118 = arith.constant 0.000000e+00 : f32
    %181 = vector.broadcast %cst_118 : f32 to vector<4x512xf32>
    %182 = tpu.concatenate %180, %181 in 0 : vector<4x512xf32>, vector<4x512xf32> -> vector<8x512xf32>
    %c24 = arith.constant 24 : index
    %c0_119 = arith.constant 0 : index
    %183 = vector.load %arg6[%c24, %c0_119] : memref<40x512xf32, #tpu.memory_space<vmem>>, vector<8x512xf32>
    tpu.vector_store %arg6[%c24, %c0_119], %182 {strides = array<i32>} : memref<40x512xf32, #tpu.memory_space<vmem>>, vector<8x512xf32>,
    %c0_120 = arith.constant 0 : index
    %c0_121 = arith.constant 0 : index
    %184 = vector.load %arg3[%c0_120, %c0_121] : memref<8x40xf32, #tpu.memory_space<vmem>>, vector<8x40xf32>
    %c0_122 = arith.constant 0 : index
    %c0_123 = arith.constant 0 : index
    %185 = vector.load %arg6[%c0_122, %c0_123] : memref<40x512xf32, #tpu.memory_space<vmem>>, vector<40x512xf32>
    %cst_124 = arith.constant dense<0.000000e+00> : vector<8x512xf32>
    %186 = tpu.matmul %184, %185, %cst_124 {dimension_numbers = #tpu.dot_dimension_numbers<[1], [0], [0], [1], [0, 0, 1, 1], [], []>} : vector<8x40xf32>, vector<40x512xf32>, vector<8x512xf32> -> vector<8x512xf32>
    %187 = vector.extract_strided_slice %186 {offsets = [0, 0], sizes = [8, 256], strides = [1, 1]} : vector<8x512xf32> to vector<8x256xf32>
    %c0_125 = arith.constant 0 : index
    %c0_126 = arith.constant 0 : index
    %c0_127 = arith.constant 0 : index
    %188 = vector.load %arg1[%c0_125, %c0_126, %c0_127] : memref<2x8x256xf32, #tpu.memory_space<vmem>>, vector<1x8x256xf32>
    %189 = vector.shape_cast %188 : vector<1x8x256xf32> to vector<8x256xf32>
    %190 = arith.addf %187, %189 : vector<8x256xf32>
    %c0_128 = arith.constant 0 : index
    %c0_129 = arith.constant 0 : index
    %c0_130 = arith.constant 0 : index
    %191 = vector.load %arg5[%c0_128, %c0_129, %c0_130] : memref<2x8x256xf32, #tpu.memory_space<vmem>>, vector<1x8x256xf32>
    %192 = vector.shape_cast %191 : vector<1x8x256xf32> to vector<8x256xf32>
    %193 = vector.shape_cast %190 : vector<8x256xf32> to vector<1x8x256xf32>
    tpu.vector_store %arg5[%c0_128, %c0_129, %c0_130], %193 {strides = array<i32>} : memref<2x8x256xf32, #tpu.memory_space<vmem>>, vector<1x8x256xf32>,
    %194 = vector.extract_strided_slice %186 {offsets = [0, 256], sizes = [8, 256], strides = [1, 1]} : vector<8x512xf32> to vector<8x256xf32>
    %c1_131 = arith.constant 1 : index
    %c0_132 = arith.constant 0 : index
    %c0_133 = arith.constant 0 : index
    %195 = vector.load %arg1[%c1_131, %c0_132, %c0_133] : memref<2x8x256xf32, #tpu.memory_space<vmem>>, vector<1x8x256xf32>
    %196 = vector.shape_cast %195 : vector<1x8x256xf32> to vector<8x256xf32>
    %197 = arith.addf %194, %196 : vector<8x256xf32>
    %c1_134 = arith.constant 1 : index
    %c0_135 = arith.constant 0 : index
    %c0_136 = arith.constant 0 : index
    %198 = vector.load %arg5[%c1_134, %c0_135, %c0_136] : memref<2x8x256xf32, #tpu.memory_space<vmem>>, vector<1x8x256xf32>
    %199 = vector.shape_cast %198 : vector<1x8x256xf32> to vector<8x256xf32>
    %200 = vector.shape_cast %197 : vector<8x256xf32> to vector<1x8x256xf32>
    tpu.vector_store %arg5[%c1_134, %c0_135, %c0_136], %200 {strides = array<i32>} : memref<2x8x256xf32, #tpu.memory_space<vmem>>, vector<1x8x256xf32>,
    return
  }
  func.func @transform_0(%arg0: i32) -> (i32, i32, i32) {
    %c0_i32 = arith.constant 0 : i32
    %c0_i32_0 = arith.constant 0 : i32
    %c0_i32_1 = arith.constant 0 : i32
    %c0_i32_2 = arith.constant 0 : i32
    return %c0_i32, %c0_i32_0, %c0_i32_1 : i32, i32, i32
  }
  func.func @transform_1(%arg0: i32) -> (i32, i32, i32) {
    %c0_i32 = arith.constant 0 : i32
    %c0_i32_0 = arith.constant 0 : i32
    %c0_i32_1 = arith.constant 0 : i32
    %c0_i32_2 = arith.constant 0 : i32
    return %c0_i32, %c0_i32_0, %c0_i32_1 : i32, i32, i32
  }
  func.func @transform_2(%arg0: i32) -> (i32, i32) {
    %c0_i32 = arith.constant 0 : i32
    %c0_i32_0 = arith.constant 0 : i32
    %c0_i32_1 = arith.constant 0 : i32
    return %c0_i32, %c0_i32_0 : i32, i32
  }
  func.func @transform_3(%arg0: i32) -> (i32, i32, i32) {
    %c0_i32 = arith.constant 0 : i32
    %c0_i32_0 = arith.constant 0 : i32
    %c0_i32_1 = arith.constant 0 : i32
    %c0_i32_2 = arith.constant 0 : i32
    return %c0_i32, %c0_i32_0, %c0_i32_1 : i32, i32, i32
  }
  func.func @transform_4(%arg0: i32) -> (i32, i32, i32) {
    %c0_i32 = arith.constant 0 : i32
    %c0_i32_0 = arith.constant 0 : i32
    %c0_i32_1 = arith.constant 0 : i32
    %c0_i32_2 = arith.constant 0 : i32
    return %c0_i32, %c0_i32_0, %c0_i32_1 : i32, i32, i32
  }
}

</mosaic_0001>

<llo_original>
// kernel: rdb_forward.1
$region0: #{rdb_forward.1}
  #allocation0 [shape = 'u32[]', space=smem, size = 0x4, offset = 0x4, fixed_abs, tag = 'smem constant byte address 0x4 - core index']
  #allocation1 [shape = 'u32[144,128]{1,0:T(1,128)}', space=vmem, size = 0x12000, scoped, tag = 'internal scratch']
  #allocation2 [shape = 'f32[40,512]{1,0:T(8,128)}', space=vmem, size = 0x14000, scoped, tag = 'scratch operand']
  %s0 = inlined_call_operand.vmem [shape: f32[2,8,256], index: 0, kind: input, shape index: {}]
  %s1 = inlined_call_operand.vmem [shape: f32[3,36,40], index: 1, kind: input, shape index: {}]
  %s2 = inlined_call_operand.vmem [shape: f32[8,40], index: 2, kind: input, shape index: {}]
  %s3 = inlined_call_operand.vmem [shape: f32[8,4,512], index: 3, kind: input, shape index: {}]
  %s4 = inlined_call_operand.vmem [shape: f32[2,8,256], index: 4, kind: output, shape index: {}]
  %s5 = sld [smem:[#allocation0]]
  $region26: #{rdb_forward.1} parent=0
    _
  %s7 = ssub.s32 1, %s5
  %s8 = scalar_select 0, %s7, %s5
  // Predicated region
  $region2: #{rdb_forward.1} parent=0 // pred_check
    _
  $region3: #{rdb_forward.1} parent=0 // pred_check_branch
    %10 = sbr.rel (0) target = $region5
  $region4: #{rdb_forward.1} parent=0 // pred_region
    _
  $region5: #{rdb_forward.1} parent=0 // pred_fallthru
    _
  // Predicated region
  $region6: #{rdb_forward.1} parent=0 // pred_check
    _
  $region7: #{rdb_forward.1} parent=0 // pred_check_branch
    %12 = sbr.rel (0) target = $region9
  $region8: #{rdb_forward.1} parent=0 // pred_region
    _
  $region9: #{rdb_forward.1} parent=0 // pred_fallthru
    _
  // Predicated region
  $region10: #{rdb_forward.1} parent=0 // pred_check
    _
  $region11: #{rdb_forward.1} parent=0 // pred_check_branch
    %14 = sbr.rel (0) target = $region13
  $region12: #{rdb_forward.1} parent=0 // pred_region
    _
  $region13: #{rdb_forward.1} parent=0 // pred_fallthru
    _
  // Predicated region
  $region14: #{rdb_forward.1} parent=0 // pred_check
    _
  $region15: #{rdb_forward.1} parent=0 // pred_check_branch
    %16 = sbr.rel (0) target = $region17
  $region16: #{rdb_forward.1} parent=0 // pred_region
    _
  $region17: #{rdb_forward.1} parent=0 // pred_fallthru
    _
  %17 = vst [vmem:[#allocation2 + $0x20] sm:$0xff] 0.0
  %18 = vst [vmem:[#allocation2 + $0x28] sm:$0xff] 0.0
  %19 = vst [vmem:[#allocation2 + $0x30] sm:$0xff] 0.0
  %20 = vst [vmem:[#allocation2 + $0x38] sm:$0xff] 0.0
  %21 = vst [vmem:[#allocation2 + $0x40] sm:$0xff] 0.0
  %22 = vst [vmem:[#allocation2 + $0x48] sm:$0xff] 0.0
  %23 = vst [vmem:[#allocation2 + $0x50] sm:$0xff] 0.0
  %24 = vst [vmem:[#allocation2 + $0x58] sm:$0xff] 0.0
  %25 = vst [vmem:[#allocation2 + $0x60] sm:$0xff] 0.0
  %26 = vst [vmem:[#allocation2 + $0x68] sm:$0xff] 0.0
  %27 = vst [vmem:[#allocation2 + $0x70] sm:$0xff] 0.0
  %28 = vst [vmem:[#allocation2 + $0x78] sm:$0xff] 0.0
  %29 = vst [vmem:[#allocation2 + $0x80] sm:$0xff] 0.0
  %30 = vst [vmem:[#allocation2 + $0x88] sm:$0xff] 0.0
  %31 = vst [vmem:[#allocation2 + $0x90] sm:$0xff] 0.0
  %32 = vst [vmem:[#allocation2 + $0x98] sm:$0xff] 0.0
  %v33 = vlaneseq
  %vm34 = vcmp.ge.s32.totalorder %v33, 0
  %vm35 = vcmp.lt.s32.totalorder %v33, 512
  %vm36 = vmand %vm34, %vm35
  %s37 = scalar_lea.vmem [#allocation2], 128
  %38 = vst.msk [vmem:[%s37] ss:$8 sm:$0xf] %vm36, 1.0
  %39 = vst.msk [vmem:[%s37] ss:$8 sm:$0x0] %vm36, 1.0
  %v40 = vld [vmem:[%s0] sm:$0xff]
  %v41 = vld [vmem:[%s0 + $0x8] sm:$0xff]
  %42 = vst [vmem:[#allocation2] sm:$0xff] %v40
  %43 = vst [vmem:[#allocation2 + $0x8] sm:$0xff] %v41
  %s44 = scalar_lea.vmem %s0, 16
  %v45 = vld [vmem:[%s44] sm:$0xff]
  %v46 = vld [vmem:[%s44 + $0x8] sm:$0xff]
  %47 = vst [vmem:[#allocation2 + $0x10] sm:$0xff] %v45
  %48 = vst [vmem:[#allocation2 + $0x18] sm:$0xff] %v46
  %v49 = vld [vmem:[%s1] sm:$0xff]
  %v50 = vld [vmem:[%s1 + $0x8] sm:$0xff]
  %v51 = vld [vmem:[%s1 + $0x10] sm:$0xff]
  %v52 = vld [vmem:[%s1 + $0x18] sm:$0xff]
  %v53 = vld [vmem:[%s1 + $0x20] sm:$0xf]
  %v54 = vld [vmem:[#allocation2] sm:$0xff]
  %v55 = vld [vmem:[#allocation2 + $0x8] sm:$0xff]
  %v56 = vld [vmem:[#allocation2 + $0x10] sm:$0xff]
  %v57 = vld [vmem:[#allocation2 + $0x18] sm:$0xff]
  %v58 = vld [vmem:[#allocation2 + $0x20] sm:$0xff]
  %v59 = vld [vmem:[#allocation2 + $0x28] sm:$0xff]
  %v60 = vld [vmem:[#allocation2 + $0x30] sm:$0xff]
  %v61 = vld [vmem:[#allocation2 + $0x38] sm:$0xff]
  %v62 = vld [vmem:[#allocation2 + $0x40] sm:$0xff]
  %v63 = vld [vmem:[#allocation2 + $0x48] sm:$0xff]
  %v64 = vld [vmem:[#allocation2 + $0x50] sm:$0xff]
  %v65 = vld [vmem:[#allocation2 + $0x58] sm:$0xff]
  %v66 = vld [vmem:[#allocation2 + $0x60] sm:$0xff]
  %v67 = vld [vmem:[#allocation2 + $0x68] sm:$0xff]
  %v68 = vld [vmem:[#allocation2 + $0x70] sm:$0xff]
  %v69 = vld [vmem:[#allocation2 + $0x78] sm:$0xff]
  %v70 = vld [vmem:[#allocation2 + $0x80] sm:$0xff]
  %v71 = vld [vmem:[#allocation2 + $0x88] sm:$0xff]
  %v72 = vld [vmem:[#allocation2 + $0x90] sm:$0xff]
  %v73 = vld [vmem:[#allocation2 + $0x98] sm:$0xff]
  %vm74 = vcmask 326656
  %v76 = vsel %vm74, %v49, 0
  %v79 = vsel %vm74, %v50, 0
  %v82 = vsel %vm74, %v51, 0
  %v85 = vsel %vm74, %v52, 0
  %v88 = vsel %vm74, %v53, 0
  %90 = vmatprep.subr.mxu0 %v55
  %91 = vmatpush1.msra.mxu0 %v54
  %92 = vmatprep.subr.mxu0 %v59
  %93 = vmatpush1.msra.mxu0 %v58
  %94 = vmatprep.subr.mxu0 %v63
  %95 = vmatpush1.msra.mxu0 %v62
  %96 = vmatprep.subr.mxu0 %v67
  %97 = vmatpush1.msra.mxu0 %v66
  %98 = vmatprep.subr.mxu0 %v71
  %99 = vmatpush1.msra.mxu0 %v70
  %100 = vmatprep.subr.mxu0 0.0
  %101 = vmatpush1.msra.mxu0 0.0
  %102 = vmatprep.subr.mxu0 0.0
  %103 = vmatpush1.msra.mxu0 0.0
  %104 = vmatprep.subr.mxu0 0.0
  %105 = vmatpush1.msra.mxu0 0.0
  %106 = vmatprep.subr.mxu0 0.0
  %107 = vmatpush1.msra.mxu0 0.0
  %108 = vmatprep.subr.mxu0 0.0
  %109 = vmatpush1.msra.mxu0 0.0
  %110 = vmatprep.subr.mxu0 0.0
  %111 = vmatpush1.msra.mxu0 0.0
  %112 = vmatprep.subr.mxu0 0.0
  %113 = vmatpush1.msra.mxu0 0.0
  %114 = vmatprep.subr.mxu0 0.0
  %115 = vmatpush1.msra.mxu0 0.0
  %116 = vmatprep.subr.mxu0 0.0
  %117 = vmatpush1.msra.mxu0 0.0
  %118 = vmatprep.subr.mxu0 0.0
  %119 = vmatpush1.msra.mxu0 0.0
  %120 = vmatprep.subr.mxu0 0.0
  %121 = vmatpush1.msra.mxu0 0.0
  %122 = vmatprep.subr.mxu0 0.0
  %123 = vmatpush1.msra.mxu0 0.0
  %124 = vmatprep.subr.mxu0 0.0
  %125 = vmatpush1.msra.mxu0 0.0
  %126 = vmatprep.subr.mxu0 0.0
  %127 = vmatpush1.msra.mxu0 0.0
  %128 = vmatprep.subr.mxu0 0.0
  %129 = vmatpush1.msra.mxu0 0.0
  %130 = vmatprep.subr.mxu0 0.0
  %131 = vmatpush1.msra.mxu0 0.0
  %132 = vmatprep.subr.mxu0 0.0
  %133 = vmatpush1.msra.mxu0 0.0
  %134 = vmatprep.subr.mxu0 0.0
  %135 = vmatpush1.msra.mxu0 0.0
  %136 = vmatprep.subr.mxu0 0.0
  %137 = vmatpush1.msra.mxu0 0.0
  %138 = vmatprep.subr.mxu0 0.0
  %139 = vmatpush1.msra.mxu0 0.0
  %140 = vmatprep.subr.mxu0 0.0
  %141 = vmatpush1.msra.mxu0 0.0
  %142 = vmatprep.subr.mxu0 0.0
  %143 = vmatpush1.msra.mxu0 0.0
  %144 = vmatprep.subr.mxu0 0.0
  %145 = vmatpush1.msra.mxu0 0.0
  %146 = vmatprep.subr.mxu0 0.0
  %147 = vmatpush1.msra.mxu0 0.0
  %148 = vmatprep.subr.mxu0 0.0
  %149 = vmatpush1.msra.mxu0 0.0
  %150 = vmatprep.subr.mxu0 0.0
  %151 = vmatpush1.msra.mxu0 0.0
  %152 = vmatprep.subr.mxu0 0.0
  %153 = vmatpush1.msra.mxu0 0.0
  %154 = vmatprep.mubr.f32.mxu0 0.0
  %155 = vmatmul.mubr.f32.gmra.mrb[0].mxu0 %v76
  %v156 = vpop.f32.mrb[0].mxu0
  %v157 = vadd.f32 0.0, %v156
  %v158 = vpop.f32.mrb[0].mxu0
  %v159 = vadd.f32 0.0, %v158
  %160 = vmatprep.mubr.f32.mxu0 0.0
  %161 = vmatmul.mubr.f32.gmra.mrb[0].mxu0 %v79
  %v162 = vpop.f32.mrb[0].mxu0
  %v163 = vadd.f32 0.0, %v162
  %v164 = vpop.f32.mrb[0].mxu0
  %v165 = vadd.f32 0.0, %v164
  %166 = vmatprep.mubr.f32.mxu0 0.0
  %167 = vmatmul.mubr.f32.gmra.mrb[0].mxu0 %v82
  %v168 = vpop.f32.mrb[0].mxu0
  %v169 = vadd.f32 0.0, %v168
  %v170 = vpop.f32.mrb[0].mxu0
  %v171 = vadd.f32 0.0, %v170
  %172 = vmatprep.mubr.f32.mxu0 0.0
  %173 = vmatmul.mubr.f32.gmra.mrb[0].mxu0 %v85
  %v174 = vpop.f32.mrb[0].mxu0
  %v175 = vadd.f32 0.0, %v174
  %v176 = vpop.f32.mrb[0].mxu0
  %v177 = vadd.f32 0.0, %v176
  %178 = vmatprep.mubr.f32.mxu0 0.0
  %179 = vmatmul.mubr.f32.gmra.mrb[0].mxu0 %v88
  %v180 = vpop.f32.mrb[0].mxu0
  %v181 = vadd.f32 0.0, %v180
  %v182 = vpop.f32.mrb[0].mxu0
  %v183 = vadd.f32 0.0, %v182
  %184 = vdwg.mxu0
  %185 = vmatprep.subr.mxu0 %v57
  %186 = vmatpush1.msra.mxu0 %v56
  %187 = vmatprep.subr.mxu0 %v61
  %188 = vmatpush1.msra.mxu0 %v60
  %189 = vmatprep.subr.mxu0 %v65
  %190 = vmatpush1.msra.mxu0 %v64
  %191 = vmatprep.subr.mxu0 %v69
  %192 = vmatpush1.msra.mxu0 %v68
  %193 = vmatprep.subr.mxu0 %v73
  %194 = vmatpush1.msra.mxu0 %v72
  %195 = vmatprep.subr.mxu0 0.0
  %196 = vmatpush1.msra.mxu0 0.0
  %197 = vmatprep.subr.mxu0 0.0
  %198 = vmatpush1.msra.mxu0 0.0
  %199 = vmatprep.subr.mxu0 0.0
  %200 = vmatpush1.msra.mxu0 0.0
  %201 = vmatprep.subr.mxu0 0.0
  %202 = vmatpush1.msra.mxu0 0.0
  %203 = vmatprep.subr.mxu0 0.0
  %204 = vmatpush1.msra.mxu0 0.0
  %205 = vmatprep.subr.mxu0 0.0
  %206 = vmatpush1.msra.mxu0 0.0
  %207 = vmatprep.subr.mxu0 0.0
  %208 = vmatpush1.msra.mxu0 0.0
  %209 = vmatprep.subr.mxu0 0.0
  %210 = vmatpush1.msra.mxu0 0.0
  %211 = vmatprep.subr.mxu0 0.0
  %212 = vmatpush1.msra.mxu0 0.0
  %213 = vmatprep.subr.mxu0 0.0
  %214 = vmatpush1.msra.mxu0 0.0
  %215 = vmatprep.subr.mxu0 0.0
  %216 = vmatpush1.msra.mxu0 0.0
  %217 = vmatprep.subr.mxu0 0.0
  %218 = vmatpush1.msra.mxu0 0.0
  %219 = vmatprep.subr.mxu0 0.0
  %220 = vmatpush1.msra.mxu0 0.0
  %221 = vmatprep.subr.mxu0 0.0
  %222 = vmatpush1.msra.mxu0 0.0
  %223 = vmatprep.subr.mxu0 0.0
  %224 = vmatpush1.msra.mxu0 0.0
  %225 = vmatprep.subr.mxu0 0.0
  %226 = vmatpush1.msra.mxu0 0.0
  %227 = vmatprep.subr.mxu0 0.0
  %228 = vmatpush1.msra.mxu0 0.0
  %229 = vmatprep.subr.mxu0 0.0
  %230 = vmatpush1.msra.mxu0 0.0
  %231 = vmatprep.subr.mxu0 0.0
  %232 = vmatpush1.msra.mxu0 0.0
  %233 = vmatprep.subr.mxu0 0.0
  %234 = vmatpush1.msra.mxu0 0.0
  %235 = vmatprep.subr.mxu0 0.0
  %236 = vmatpush1.msra.mxu0 0.0
  %237 = vmatprep.subr.mxu0 0.0
  %238 = vmatpush1.msra.mxu0 0.0
  %239 = vmatprep.subr.mxu0 0.0
  %240 = vmatpush1.msra.mxu0 0.0
  %241 = vmatprep.subr.mxu0 0.0
  %242 = vmatpush1.msra.mxu0 0.0
  %243 = vmatprep.subr.mxu0 0.0
  %244 = vmatpush1.msra.mxu0 0.0
  %245 = vmatprep.subr.mxu0 0.0
  %246 = vmatpush1.msra.mxu0 0.0
  %247 = vmatprep.subr.mxu0 0.0
  %248 = vmatpush1.msra.mxu0 0.0
  %249 = vmatprep.mubr.f32.mxu0 0.0
  %250 = vmatmul.mubr.f32.gmra.mrb[0].mxu0 %v76
  %v251 = vpop.f32.mrb[0].mxu0
  %v252 = vadd.f32 0.0, %v251
  %v253 = vpop.f32.mrb[0].mxu0
  %v254 = vadd.f32 0.0, %v253
  %255 = vmatprep.mubr.f32.mxu0 0.0
  %256 = vmatmul.mubr.f32.gmra.mrb[0].mxu0 %v79
  %v257 = vpop.f32.mrb[0].mxu0
  %v258 = vadd.f32 0.0, %v257
  %v259 = vpop.f32.mrb[0].mxu0
  %v260 = vadd.f32 0.0, %v259
  %261 = vmatprep.mubr.f32.mxu0 0.0
  %262 = vmatmul.mubr.f32.gmra.mrb[0].mxu0 %v82
  %v263 = vpop.f32.mrb[0].mxu0
  %v264 = vadd.f32 0.0, %v263
  %v265 = vpop.f32.mrb[0].mxu0
  %v266 = vadd.f32 0.0, %v265
  %267 = vmatprep.mubr.f32.mxu0 0.0
  %268 = vmatmul.mubr.f32.gmra.mrb[0].mxu0 %v85
  %v269 = vpop.f32.mrb[0].mxu0
  %v270 = vadd.f32 0.0, %v269
  %v271 = vpop.f32.mrb[0].mxu0
  %v272 = vadd.f32 0.0, %v271
  %273 = vmatprep.mubr.f32.mxu0 0.0
  %274 = vmatmul.mubr.f32.gmra.mrb[0].mxu0 %v88
  %v275 = vpop.f32.mrb[0].mxu0
  %v276 = vadd.f32 0.0, %v275
  %v277 = vpop.f32.mrb[0].mxu0
  %v278 = vadd.f32 0.0, %v277
  %279 = vdwg.mxu0
  %280 = vrot.lane.b32.xlu0 %v157, 17
  %v281 = vpop.permute.xlu0 %280
  %282 = vrot.lane.b32.xlu0 %v159, 17
  %v283 = vpop.permute.xlu0 %282
  %284 = vrot.lane.b32.xlu0 %v252, 17
  %v285 = vpop.permute.xlu0 %284
  %286 = vrot.lane.b32.xlu0 %v254, 17
  %v287 = vpop.permute.xlu0 %286
  %v288 = vlaneseq
  %v289 = vand.u32 %v288, 127
  %vm290 = vcmp.lt.s32.totalorder %v289, 17
  %v291 = vsel %vm290, %v285, %v287
  %v292 = vsel %vm290, %v283, %v285
  %v293 = vsel %vm290, %v281, %v283
  %v294 = vsel %vm290, %v287, %v281
  %v295 = vld [vmem:[%s3] sm:$0xff]
  %v296 = vld [vmem:[%s3 + $0x8] sm:$0xff]
  %v299 = vcombine.high %v295, %v295
  %v300 = vcombine.high %v296, %v296
  %v303 = vmul.f32 %v294, %v295
  %v304 = vmul.f32 %v293, %v299
  %v305 = vmul.f32 %v292, %v296
  %v306 = vmul.f32 %v291, %v300
  %v307 = vadd.f32 %v169, %v303
  %v308 = vadd.f32 %v171, %v304
  %v309 = vadd.f32 %v264, %v305
  %v310 = vadd.f32 %v266, %v306
  %v315 = vrot.slane %v157, 4
  %v316 = vrot.slane %v159, 4
  %v317 = vrot.slane %v252, 4
  %v318 = vrot.slane %v254, 4
  %323 = vrot.lane.b32.xlu0 %v315, 16
  %v324 = vpop.permute.xlu0 %323
  %325 = vrot.lane.b32.xlu0 %v316, 16
  %v326 = vpop.permute.xlu0 %325
  %327 = vrot.lane.b32.xlu0 %v317, 16
  %v328 = vpop.permute.xlu0 %327
  %329 = vrot.lane.b32.xlu0 %v318, 16
  %v330 = vpop.permute.xlu0 %329
  %vm331 = vcmp.lt.s32.totalorder %v289, 16
  %v332 = vsel %vm331, %v328, %v330
  %v333 = vsel %vm331, %v326, %v328
  %v334 = vsel %vm331, %v324, %v326
  %v335 = vsel %vm331, %v330, %v324
  %s336 = scalar_lea.vmem %s3, 16
  %v337 = vld [vmem:[%s336] sm:$0xff]
  %v338 = vld [vmem:[%s336 + $0x8] sm:$0xff]
  %v341 = vcombine.high %v337, %v337
  %v342 = vcombine.high %v338, %v338
  %v345 = vmul.f32 %v335, %v337
  %v346 = vmul.f32 %v334, %v341
  %v347 = vmul.f32 %v333, %v338
  %v348 = vmul.f32 %v332, %v342
  %v349 = vadd.f32 %v307, %v345
  %v350 = vadd.f32 %v308, %v346
  %v351 = vadd.f32 %v309, %v347
  %v352 = vadd.f32 %v310, %v348
  %353 = vrot.lane.b32.xlu0 %v163, 15
  %v354 = vpop.permute.xlu0 %353
  %355 = vrot.lane.b32.xlu0 %v165, 15
  %v356 = vpop.permute.xlu0 %355
  %357 = vrot.lane.b32.xlu0 %v258, 15
  %v358 = vpop.permute.xlu0 %357
  %359 = vrot.lane.b32.xlu0 %v260, 15
  %v360 = vpop.permute.xlu0 %359
  %vm361 = vcmp.lt.s32.totalorder %v289, 15
  %v362 = vsel %vm361, %v358, %v360
  %v363 = vsel %vm361, %v356, %v358
  %v364 = vsel %vm361, %v354, %v356
  %v365 = vsel %vm361, %v360, %v354
  %s366 = scalar_lea.vmem %s3, 32
  %v367 = vld [vmem:[%s366] sm:$0xff]
  %v368 = vld [vmem:[%s366 + $0x8] sm:$0xff]
  %v371 = vcombine.high %v367, %v367
  %v372 = vcombine.high %v368, %v368
  %v375 = vmul.f32 %v365, %v367
  %v376 = vmul.f32 %v364, %v371
  %v377 = vmul.f32 %v363, %v368
  %v378 = vmul.f32 %v362, %v372
  %v379 = vadd.f32 %v349, %v375
  %v380 = vadd.f32 %v350, %v376
  %v381 = vadd.f32 %v351, %v377
  %v382 = vadd.f32 %v352, %v378
  %v387 = vrot.slane %v163, 4
  %v388 = vrot.slane %v165, 4
  %v389 = vrot.slane %v258, 4
  %v390 = vrot.slane %v260, 4
  %395 = vrot.lane.b32.xlu0 %v387, 1
  %v396 = vpop.permute.xlu0 %395
  %397 = vrot.lane.b32.xlu0 %v388, 1
  %v398 = vpop.permute.xlu0 %397
  %399 = vrot.lane.b32.xlu0 %v389, 1
  %v400 = vpop.permute.xlu0 %399
  %401 = vrot.lane.b32.xlu0 %v390, 1
  %v402 = vpop.permute.xlu0 %401
  %vm403 = vcmp.lt.s32.totalorder %v289, 1
  %v404 = vsel %vm403, %v400, %v402
  %v405 = vsel %vm403, %v398, %v400
  %v406 = vsel %vm403, %v396, %v398
  %v407 = vsel %vm403, %v402, %v396
  %s408 = scalar_lea.vmem %s3, 48
  %v409 = vld [vmem:[%s408] sm:$0xff]
  %v410 = vld [vmem:[%s408 + $0x8] sm:$0xff]
  %v413 = vcombine.high %v409, %v409
  %v414 = vcombine.high %v410, %v410
  %v417 = vmul.f32 %v407, %v409
  %v418 = vmul.f32 %v406, %v413
  %v419 = vmul.f32 %v405, %v410
  %v420 = vmul.f32 %v404, %v414
  %v421 = vadd.f32 %v379, %v417
  %v422 = vadd.f32 %v380, %v418
  %v423 = vadd.f32 %v381, %v419
  %v424 = vadd.f32 %v382, %v420
  %v429 = vrot.slane %v169, 4
  %v430 = vrot.slane %v171, 4
  %v431 = vrot.slane %v264, 4
  %v432 = vrot.slane %v266, 4
  %437 = vrot.lane.b32.xlu0 %v429, 127
  %v438 = vpop.permute.xlu0 %437
  %439 = vrot.lane.b32.xlu0 %v430, 127
  %v440 = vpop.permute.xlu0 %439
  %441 = vrot.lane.b32.xlu0 %v431, 127
  %v442 = vpop.permute.xlu0 %441
  %443 = vrot.lane.b32.xlu0 %v432, 127
  %v444 = vpop.permute.xlu0 %443
  %vm445 = vcmp.lt.s32.totalorder %v289, 127
  %v446 = vsel %vm445, %v442, %v444
  %v447 = vsel %vm445, %v440, %v442
  %v448 = vsel %vm445, %v438, %v440
  %v449 = vsel %vm445, %v444, %v438
  %s450 = scalar_lea.vmem %s3, 64
  %v451 = vld [vmem:[%s450] sm:$0xff]
  %v452 = vld [vmem:[%s450 + $0x8] sm:$0xff]
  %v455 = vcombine.high %v451, %v451
  %v456 = vcombine.high %v452, %v452
  %v459 = vmul.f32 %v448, %v451
  %v460 = vmul.f32 %v447, %v455
  %v461 = vmul.f32 %v446, %v452
  %v462 = vmul.f32 %v449, %v456
  %v463 = vadd.f32 %v421, %v459
  %v464 = vadd.f32 %v422, %v460
  %v465 = vadd.f32 %v423, %v461
  %v466 = vadd.f32 %v424, %v462
  %467 = vrot.lane.b32.xlu0 %v175, 113
  %v468 = vpop.permute.xlu0 %467
  %469 = vrot.lane.b32.xlu0 %v177, 113
  %v470 = vpop.permute.xlu0 %469
  %471 = vrot.lane.b32.xlu0 %v270, 113
  %v472 = vpop.permute.xlu0 %471
  %473 = vrot.lane.b32.xlu0 %v272, 113
  %v474 = vpop.permute.xlu0 %473
  %vm475 = vcmp.lt.s32.totalorder %v289, 113
  %v476 = vsel %vm475, %v472, %v474
  %v477 = vsel %vm475, %v470, %v472
  %v478 = vsel %vm475, %v468, %v470
  %v479 = vsel %vm475, %v474, %v468
  %s480 = scalar_lea.vmem %s3, 80
  %v481 = vld [vmem:[%s480] sm:$0xff]
  %v482 = vld [vmem:[%s480 + $0x8] sm:$0xff]
  %v485 = vcombine.high %v481, %v481
  %v486 = vcombine.high %v482, %v482
  %v489 = vmul.f32 %v478, %v481
  %v490 = vmul.f32 %v477, %v485
  %v491 = vmul.f32 %v476, %v482
  %v492 = vmul.f32 %v479, %v486
  %v493 = vadd.f32 %v463, %v489
  %v494 = vadd.f32 %v464, %v490
  %v495 = vadd.f32 %v465, %v491
  %v496 = vadd.f32 %v466, %v492
  %v501 = vrot.slane %v175, 4
  %v502 = vrot.slane %v177, 4
  %v503 = vrot.slane %v270, 4
  %v504 = vrot.slane %v272, 4
  %509 = vrot.lane.b32.xlu0 %v501, 112
  %v510 = vpop.permute.xlu0 %509
  %511 = vrot.lane.b32.xlu0 %v502, 112
  %v512 = vpop.permute.xlu0 %511
  %513 = vrot.lane.b32.xlu0 %v503, 112
  %v514 = vpop.permute.xlu0 %513
  %515 = vrot.lane.b32.xlu0 %v504, 112
  %v516 = vpop.permute.xlu0 %515
  %vm517 = vcmp.lt.s32.totalorder %v289, 112
  %v518 = vsel %vm517, %v514, %v516
  %v519 = vsel %vm517, %v512, %v514
  %v520 = vsel %vm517, %v510, %v512
  %v521 = vsel %vm517, %v516, %v510
  %s522 = scalar_lea.vmem %s3, 96
  %v523 = vld [vmem:[%s522] sm:$0xff]
  %v524 = vld [vmem:[%s522 + $0x8] sm:$0xff]
  %v527 = vcombine.high %v523, %v523
  %v528 = vcombine.high %v524, %v524
  %v531 = vmul.f32 %v520, %v523
  %v532 = vmul.f32 %v519, %v527
  %v533 = vmul.f32 %v518, %v524
  %v534 = vmul.f32 %v521, %v528
  %v535 = vadd.f32 %v493, %v531
  %v536 = vadd.f32 %v494, %v532
  %v537 = vadd.f32 %v495, %v533
  %v538 = vadd.f32 %v496, %v534
  %539 = vrot.lane.b32.xlu0 %v181, 111
  %v540 = vpop.permute.xlu0 %539
  %541 = vrot.lane.b32.xlu0 %v183, 111
  %v542 = vpop.permute.xlu0 %541
  %543 = vrot.lane.b32.xlu0 %v276, 111
  %v544 = vpop.permute.xlu0 %543
  %545 = vrot.lane.b32.xlu0 %v278, 111
  %v546 = vpop.permute.xlu0 %545
  %vm547 = vcmp.lt.s32.totalorder %v289, 111
  %v548 = vsel %vm547, %v544, %v546
  %v549 = vsel %vm547, %v542, %v544
  %v550 = vsel %vm547, %v540, %v542
  %v551 = vsel %vm547, %v546, %v540
  %s552 = scalar_lea.vmem %s3, 112
  %v553 = vld [vmem:[%s552] sm:$0xff]
  %v554 = vld [vmem:[%s552 + $0x8] sm:$0xff]
  %v557 = vcombine.high %v553, %v553
  %v558 = vcombine.high %v554, %v554
  %v561 = vmul.f32 %v550, %v553
  %v562 = vmul.f32 %v549, %v557
  %v563 = vmul.f32 %v548, %v554
  %v564 = vmul.f32 %v551, %v558
  %v565 = vadd.f32 %v535, %v561
  %v566 = vadd.f32 %v536, %v562
  %v567 = vadd.f32 %v537, %v563
  %v568 = vadd.f32 %v538, %v564
  %v569 = vmax.f32 %v565, 0.0
  %v570 = vmax.f32 %v566, 0.0
  %v571 = vmax.f32 %v567, 0.0
  %v572 = vmax.f32 %v568, 0.0
  %vm573 = vcmask 1043456
  %v574 = vsel %vm573, %v569, 0.0
  %v575 = vsel %vm573, %v570, 0.0
  %v576 = vsel %vm573, %v571, 0.0
  %v577 = vsel %vm573, %v572, 0.0
  %578 = vst [vmem:[#allocation2 + $0x20] sm:$0xff] %v574
  %579 = vst [vmem:[#allocation2 + $0x28] sm:$0xff] %v575
  %580 = vst [vmem:[#allocation2 + $0x30] sm:$0xff] %v576
  %581 = vst [vmem:[#allocation2 + $0x38] sm:$0xff] %v577
  %s582 = scalar_lea.vmem %s1, 40
  %v583 = vld [vmem:[%s582] sm:$0xff]
  %v584 = vld [vmem:[%s582 + $0x8] sm:$0xff]
  %v585 = vld [vmem:[%s582 + $0x10] sm:$0xff]
  %v586 = vld [vmem:[%s582 + $0x18] sm:$0xff]
  %v587 = vld [vmem:[%s582 + $0x20] sm:$0xf]
  %v588 = vld [vmem:[#allocation2] sm:$0xff]
  %v589 = vld [vmem:[#allocation2 + $0x8] sm:$0xff]
  %v590 = vld [vmem:[#allocation2 + $0x10] sm:$0xff]
  %v591 = vld [vmem:[#allocation2 + $0x18] sm:$0xff]
  %v592 = vld [vmem:[#allocation2 + $0x20] sm:$0xff]
  %v593 = vld [vmem:[#allocation2 + $0x28] sm:$0xff]
  %v594 = vld [vmem:[#allocation2 + $0x30] sm:$0xff]
  %v595 = vld [vmem:[#allocation2 + $0x38] sm:$0xff]
  %v596 = vld [vmem:[#allocation2 + $0x40] sm:$0xff]
  %v597 = vld [vmem:[#allocation2 + $0x48] sm:$0xff]
  %v598 = vld [vmem:[#allocation2 + $0x50] sm:$0xff]
  %v599 = vld [vmem:[#allocation2 + $0x58] sm:$0xff]
  %v600 = vld [vmem:[#allocation2 + $0x60] sm:$0xff]
  %v601 = vld [vmem:[#allocation2 + $0x68] sm:$0xff]
  %v602 = vld [vmem:[#allocation2 + $0x70] sm:$0xff]
  %v603 = vld [vmem:[#allocation2 + $0x78] sm:$0xff]
  %v604 = vld [vmem:[#allocation2 + $0x80] sm:$0xff]
  %v605 = vld [vmem:[#allocation2 + $0x88] sm:$0xff]
  %v606 = vld [vmem:[#allocation2 + $0x90] sm:$0xff]
  %v607 = vld [vmem:[#allocation2 + $0x98] sm:$0xff]
  %v609 = vsel %vm74, %v583, 0
  %v612 = vsel %vm74, %v584, 0
  %v615 = vsel %vm74, %v585, 0
  %v618 = vsel %vm74, %v586, 0
  %v621 = vsel %vm74, %v587, 0
  %623 = vmatprep.subr.mxu0 %v589
  %624 = vmatpush1.msra.mxu0 %v588
  %625 = vmatprep.subr.mxu0 %v593
  %626 = vmatpush1.msra.mxu0 %v592
  %627 = vmatprep.subr.mxu0 %v597
  %628 = vmatpush1.msra.mxu0 %v596
  %629 = vmatprep.subr.mxu0 %v601
  %630 = vmatpush1.msra.mxu0 %v600
  %631 = vmatprep.subr.mxu0 %v605
  %632 = vmatpush1.msra.mxu0 %v604
  %633 = vmatprep.subr.mxu0 0.0
  %634 = vmatpush1.msra.mxu0 0.0
  %635 = vmatprep.subr.mxu0 0.0
  %636 = vmatpush1.msra.mxu0 0.0
  %637 = vmatprep.subr.mxu0 0.0
  %638 = vmatpush1.msra.mxu0 0.0
  %639 = vmatprep.subr.mxu0 0.0
  %640 = vmatpush1.msra.mxu0 0.0
  %641 = vmatprep.subr.mxu0 0.0
  %642 = vmatpush1.msra.mxu0 0.0
  %643 = vmatprep.subr.mxu0 0.0
  %644 = vmatpush1.msra.mxu0 0.0
  %645 = vmatprep.subr.mxu0 0.0
  %646 = vmatpush1.msra.mxu0 0.0
  %647 = vmatprep.subr.mxu0 0.0
  %648 = vmatpush1.msra.mxu0 0.0
  %649 = vmatprep.subr.mxu0 0.0
  %650 = vmatpush1.msra.mxu0 0.0
  %651 = vmatprep.subr.mxu0 0.0
  %652 = vmatpush1.msra.mxu0 0.0
  %653 = vmatprep.subr.mxu0 0.0
  %654 = vmatpush1.msra.mxu0 0.0
  %655 = vmatprep.subr.mxu0 0.0
  %656 = vmatpush1.msra.mxu0 0.0
  %657 = vmatprep.subr.mxu0 0.0
  %658 = vmatpush1.msra.mxu0 0.0
  %659 = vmatprep.subr.mxu0 0.0
  %660 = vmatpush1.msra.mxu0 0.0
  %661 = vmatprep.subr.mxu0 0.0
  %662 = vmatpush1.msra.mxu0 0.0
  %663 = vmatprep.subr.mxu0 0.0
  %664 = vmatpush1.msra.mxu0 0.0
  %665 = vmatprep.subr.mxu0 0.0
  %666 = vmatpush1.msra.mxu0 0.0
  %667 = vmatprep.subr.mxu0 0.0
  %668 = vmatpush1.msra.mxu0 0.0
  %669 = vmatprep.subr.mxu0 0.0
  %670 = vmatpush1.msra.mxu0 0.0
  %671 = vmatprep.subr.mxu0 0.0
  %672 = vmatpush1.msra.mxu0 0.0
  %673 = vmatprep.subr.mxu0 0.0
  %674 = vmatpush1.msra.mxu0 0.0
  %675 = vmatprep.subr.mxu0 0.0
  %676 = vmatpush1.msra.mxu0 0.0
  %677 = vmatprep.subr.mxu0 0.0
  %678 = vmatpush1.msra.mxu0 0.0
  %679 = vmatprep.subr.mxu0 0.0
  %680 = vmatpush1.msra.mxu0 0.0
  %681 = vmatprep.subr.mxu0 0.0
  %682 = vmatpush1.msra.mxu0 0.0
  %683 = vmatprep.subr.mxu0 0.0
  %684 = vmatpush1.msra.mxu0 0.0
  %685 = vmatprep.subr.mxu0 0.0
  %686 = vmatpush1.msra.mxu0 0.0
  %687 = vmatprep.mubr.f32.mxu0 0.0
  %688 = vmatmul.mubr.f32.gmra.mrb[0].mxu0 %v609
  %v689 = vpop.f32.mrb[0].mxu0
  %v690 = vadd.f32 0.0, %v689
  %v691 = vpop.f32.mrb[0].mxu0
  %v692 = vadd.f32 0.0, %v691
  %693 = vmatprep.mubr.f32.mxu0 0.0
  %694 = vmatmul.mubr.f32.gmra.mrb[0].mxu0 %v612
  %v695 = vpop.f32.mrb[0].mxu0
  %v696 = vadd.f32 0.0, %v695
  %v697 = vpop.f32.mrb[0].mxu0
  %v698 = vadd.f32 0.0, %v697
  %699 = vmatprep.mubr.f32.mxu0 0.0
  %700 = vmatmul.mubr.f32.gmra.mrb[0].mxu0 %v615
  %v701 = vpop.f32.mrb[0].mxu0
  %v702 = vadd.f32 0.0, %v701
  %v703 = vpop.f32.mrb[0].mxu0
  %v704 = vadd.f32 0.0, %v703
  %705 = vmatprep.mubr.f32.mxu0 0.0
  %706 = vmatmul.mubr.f32.gmra.mrb[0].mxu0 %v618
  %v707 = vpop.f32.mrb[0].mxu0
  %v708 = vadd.f32 0.0, %v707
  %v709 = vpop.f32.mrb[0].mxu0
  %v710 = vadd.f32 0.0, %v709
  %711 = vmatprep.mubr.f32.mxu0 0.0
  %712 = vmatmul.mubr.f32.gmra.mrb[0].mxu0 %v621
  %v713 = vpop.f32.mrb[0].mxu0
  %v714 = vadd.f32 0.0, %v713
  %v715 = vpop.f32.mrb[0].mxu0
  %v716 = vadd.f32 0.0, %v715
  %717 = vdwg.mxu0
  %718 = vmatprep.subr.mxu0 %v591
  %719 = vmatpush1.msra.mxu0 %v590
  %720 = vmatprep.subr.mxu0 %v595
  %721 = vmatpush1.msra.mxu0 %v594
  %722 = vmatprep.subr.mxu0 %v599
  %723 = vmatpush1.msra.mxu0 %v598
  %724 = vmatprep.subr.mxu0 %v603
  %725 = vmatpush1.msra.mxu0 %v602
  %726 = vmatprep.subr.mxu0 %v607
  %727 = vmatpush1.msra.mxu0 %v606
  %728 = vmatprep.subr.mxu0 0.0
  %729 = vmatpush1.msra.mxu0 0.0
  %730 = vmatprep.subr.mxu0 0.0
  %731 = vmatpush1.msra.mxu0 0.0
  %732 = vmatprep.subr.mxu0 0.0
  %733 = vmatpush1.msra.mxu0 0.0
  %734 = vmatprep.subr.mxu0 0.0
  %735 = vmatpush1.msra.mxu0 0.0
  %736 = vmatprep.subr.mxu0 0.0
  %737 = vmatpush1.msra.mxu0 0.0
  %738 = vmatprep.subr.mxu0 0.0
  %739 = vmatpush1.msra.mxu0 0.0
  %740 = vmatprep.subr.mxu0 0.0
  %741 = vmatpush1.msra.mxu0 0.0
  %742 = vmatprep.subr.mxu0 0.0
  %743 = vmatpush1.msra.mxu0 0.0
  %744 = vmatprep.subr.mxu0 0.0
  %745 = vmatpush1.msra.mxu0 0.0
  %746 = vmatprep.subr.mxu0 0.0
  %747 = vmatpush1.msra.mxu0 0.0
  %748 = vmatprep.subr.mxu0 0.0
  %749 = vmatpush1.msra.mxu0 0.0
  %750 = vmatprep.subr.mxu0 0.0
  %751 = vmatpush1.msra.mxu0 0.0
  %752 = vmatprep.subr.mxu0 0.0
  %753 = vmatpush1.msra.mxu0 0.0
  %754 = vmatprep.subr.mxu0 0.0
  %755 = vmatpush1.msra.mxu0 0.0
  %756 = vmatprep.subr.mxu0 0.0
  %757 = vmatpush1.msra.mxu0 0.0
  %758 = vmatprep.subr.mxu0 0.0
  %759 = vmatpush1.msra.mxu0 0.0
  %760 = vmatprep.subr.mxu0 0.0
  %761 = vmatpush1.msra.mxu0 0.0
  %762 = vmatprep.subr.mxu0 0.0
  %763 = vmatpush1.msra.mxu0 0.0
  %764 = vmatprep.subr.mxu0 0.0
  %765 = vmatpush1.msra.mxu0 0.0
  %766 = vmatprep.subr.mxu0 0.0
  %767 = vmatpush1.msra.mxu0 0.0
  %768 = vmatprep.subr.mxu0 0.0
  %769 = vmatpush1.msra.mxu0 0.0
  %770 = vmatprep.subr.mxu0 0.0
  %771 = vmatpush1.msra.mxu0 0.0
  %772 = vmatprep.subr.mxu0 0.0
  %773 = vmatpush1.msra.mxu0 0.0
  %774 = vmatprep.subr.mxu0 0.0
  %775 = vmatpush1.msra.mxu0 0.0
  %776 = vmatprep.subr.mxu0 0.0
  %777 = vmatpush1.msra.mxu0 0.0
  %778 = vmatprep.subr.mxu0 0.0
  %779 = vmatpush1.msra.mxu0 0.0
  %780 = vmatprep.subr.mxu0 0.0
  %781 = vmatpush1.msra.mxu0 0.0
  %782 = vmatprep.mubr.f32.mxu0 0.0
  %783 = vmatmul.mubr.f32.gmra.mrb[0].mxu0 %v609
  %v784 = vpop.f32.mrb[0].mxu0
  %v785 = vadd.f32 0.0, %v784
  %v786 = vpop.f32.mrb[0].mxu0
  %v787 = vadd.f32 0.0, %v786
  %788 = vmatprep.mubr.f32.mxu0 0.0
  %789 = vmatmul.mubr.f32.gmra.mrb[0].mxu0 %v612
  %v790 = vpop.f32.mrb[0].mxu0
  %v791 = vadd.f32 0.0, %v790
  %v792 = vpop.f32.mrb[0].mxu0
  %v793 = vadd.f32 0.0, %v792
  %794 = vmatprep.mubr.f32.mxu0 0.0
  %795 = vmatmul.mubr.f32.gmra.mrb[0].mxu0 %v615
  %v796 = vpop.f32.mrb[0].mxu0
  %v797 = vadd.f32 0.0, %v796
  %v798 = vpop.f32.mrb[0].mxu0
  %v799 = vadd.f32 0.0, %v798
  %800 = vmatprep.mubr.f32.mxu0 0.0
  %801 = vmatmul.mubr.f32.gmra.mrb[0].mxu0 %v618
  %v802 = vpop.f32.mrb[0].mxu0
  %v803 = vadd.f32 0.0, %v802
  %v804 = vpop.f32.mrb[0].mxu0
  %v805 = vadd.f32 0.0, %v804
  %806 = vmatprep.mubr.f32.mxu0 0.0
  %807 = vmatmul.mubr.f32.gmra.mrb[0].mxu0 %v621
  %v808 = vpop.f32.mrb[0].mxu0
  %v809 = vadd.f32 0.0, %v808
  %v810 = vpop.f32.mrb[0].mxu0
  %v811 = vadd.f32 0.0, %v810
  %812 = vdwg.mxu0
  %813 = vrot.lane.b32.xlu0 %v690, 17
  %v814 = vpop.permute.xlu0 %813
  %815 = vrot.lane.b32.xlu0 %v692, 17
  %v816 = vpop.permute.xlu0 %815
  %817 = vrot.lane.b32.xlu0 %v785, 17
  %v818 = vpop.permute.xlu0 %817
  %819 = vrot.lane.b32.xlu0 %v787, 17
  %v820 = vpop.permute.xlu0 %819
  %v821 = vsel %vm290, %v818, %v820
  %v822 = vsel %vm290, %v816, %v818
  %v823 = vsel %vm290, %v814, %v816
  %v824 = vsel %vm290, %v820, %v814
  %v825 = vld [vmem:[%s3] sm:$0xff]
  %v826 = vld [vmem:[%s3 + $0x8] sm:$0xff]
  %v829 = vcombine.high %v825, %v825
  %v830 = vcombine.high %v826, %v826
  %v833 = vmul.f32 %v824, %v825
  %v834 = vmul.f32 %v823, %v829
  %v835 = vmul.f32 %v822, %v826
  %v836 = vmul.f32 %v821, %v830
  %v837 = vadd.f32 %v702, %v833
  %v838 = vadd.f32 %v704, %v834
  %v839 = vadd.f32 %v797, %v835
  %v840 = vadd.f32 %v799, %v836
  %v845 = vrot.slane %v690, 4
  %v846 = vrot.slane %v692, 4
  %v847 = vrot.slane %v785, 4
  %v848 = vrot.slane %v787, 4
  %853 = vrot.lane.b32.xlu0 %v845, 16
  %v854 = vpop.permute.xlu0 %853
  %855 = vrot.lane.b32.xlu0 %v846, 16
  %v856 = vpop.permute.xlu0 %855
  %857 = vrot.lane.b32.xlu0 %v847, 16
  %v858 = vpop.permute.xlu0 %857
  %859 = vrot.lane.b32.xlu0 %v848, 16
  %v860 = vpop.permute.xlu0 %859
  %v861 = vsel %vm331, %v858, %v860
  %v862 = vsel %vm331, %v856, %v858
  %v863 = vsel %vm331, %v854, %v856
  %v864 = vsel %vm331, %v860, %v854
  %v865 = vld [vmem:[%s336] sm:$0xff]
  %v866 = vld [vmem:[%s336 + $0x8] sm:$0xff]
  %v869 = vcombine.high %v865, %v865
  %v870 = vcombine.high %v866, %v866
  %v873 = vmul.f32 %v864, %v865
  %v874 = vmul.f32 %v863, %v869
  %v875 = vmul.f32 %v862, %v866
  %v876 = vmul.f32 %v861, %v870
  %v877 = vadd.f32 %v837, %v873
  %v878 = vadd.f32 %v838, %v874
  %v879 = vadd.f32 %v839, %v875
  %v880 = vadd.f32 %v840, %v876
  %881 = vrot.lane.b32.xlu0 %v696, 15
  %v882 = vpop.permute.xlu0 %881
  %883 = vrot.lane.b32.xlu0 %v698, 15
  %v884 = vpop.permute.xlu0 %883
  %885 = vrot.lane.b32.xlu0 %v791, 15
  %v886 = vpop.permute.xlu0 %885
  %887 = vrot.lane.b32.xlu0 %v793, 15
  %v888 = vpop.permute.xlu0 %887
  %v889 = vsel %vm361, %v886, %v888
  %v890 = vsel %vm361, %v884, %v886
  %v891 = vsel %vm361, %v882, %v884
  %v892 = vsel %vm361, %v888, %v882
  %v893 = vld [vmem:[%s366] sm:$0xff]
  %v894 = vld [vmem:[%s366 + $0x8] sm:$0xff]
  %v897 = vcombine.high %v893, %v893
  %v898 = vcombine.high %v894, %v894
  %v901 = vmul.f32 %v892, %v893
  %v902 = vmul.f32 %v891, %v897
  %v903 = vmul.f32 %v890, %v894
  %v904 = vmul.f32 %v889, %v898
  %v905 = vadd.f32 %v877, %v901
  %v906 = vadd.f32 %v878, %v902
  %v907 = vadd.f32 %v879, %v903
  %v908 = vadd.f32 %v880, %v904
  %v913 = vrot.slane %v696, 4
  %v914 = vrot.slane %v698, 4
  %v915 = vrot.slane %v791, 4
  %v916 = vrot.slane %v793, 4
  %921 = vrot.lane.b32.xlu0 %v913, 1
  %v922 = vpop.permute.xlu0 %921
  %923 = vrot.lane.b32.xlu0 %v914, 1
  %v924 = vpop.permute.xlu0 %923
  %925 = vrot.lane.b32.xlu0 %v915, 1
  %v926 = vpop.permute.xlu0 %925
  %927 = vrot.lane.b32.xlu0 %v916, 1
  %v928 = vpop.permute.xlu0 %927
  %v929 = vsel %vm403, %v926, %v928
  %v930 = vsel %vm403, %v924, %v926
  %v931 = vsel %vm403, %v922, %v924
  %v932 = vsel %vm403, %v928, %v922
  %v933 = vld [vmem:[%s408] sm:$0xff]
  %v934 = vld [vmem:[%s408 + $0x8] sm:$0xff]
  %v937 = vcombine.high %v933, %v933
  %v938 = vcombine.high %v934, %v934
  %v941 = vmul.f32 %v932, %v933
  %v942 = vmul.f32 %v931, %v937
  %v943 = vmul.f32 %v930, %v934
  %v944 = vmul.f32 %v929, %v938
  %v945 = vadd.f32 %v905, %v941
  %v946 = vadd.f32 %v906, %v942
  %v947 = vadd.f32 %v907, %v943
  %v948 = vadd.f32 %v908, %v944
  %v953 = vrot.slane %v702, 4
  %v954 = vrot.slane %v704, 4
  %v955 = vrot.slane %v797, 4
  %v956 = vrot.slane %v799, 4
  %961 = vrot.lane.b32.xlu0 %v953, 127
  %v962 = vpop.permute.xlu0 %961
  %963 = vrot.lane.b32.xlu0 %v954, 127
  %v964 = vpop.permute.xlu0 %963
  %965 = vrot.lane.b32.xlu0 %v955, 127
  %v966 = vpop.permute.xlu0 %965
  %967 = vrot.lane.b32.xlu0 %v956, 127
  %v968 = vpop.permute.xlu0 %967
  %v969 = vsel %vm445, %v966, %v968
  %v970 = vsel %vm445, %v964, %v966
  %v971 = vsel %vm445, %v962, %v964
  %v972 = vsel %vm445, %v968, %v962
  %v973 = vld [vmem:[%s450] sm:$0xff]
  %v974 = vld [vmem:[%s450 + $0x8] sm:$0xff]
  %v977 = vcombine.high %v973, %v973
  %v978 = vcombine.high %v974, %v974
  %v981 = vmul.f32 %v971, %v973
  %v982 = vmul.f32 %v970, %v977
  %v983 = vmul.f32 %v969, %v974
  %v984 = vmul.f32 %v972, %v978
  %v985 = vadd.f32 %v945, %v981
  %v986 = vadd.f32 %v946, %v982
  %v987 = vadd.f32 %v947, %v983
  %v988 = vadd.f32 %v948, %v984
  %989 = vrot.lane.b32.xlu0 %v708, 113
  %v990 = vpop.permute.xlu0 %989
  %991 = vrot.lane.b32.xlu0 %v710, 113
  %v992 = vpop.permute.xlu0 %991
  %993 = vrot.lane.b32.xlu0 %v803, 113
  %v994 = vpop.permute.xlu0 %993
  %995 = vrot.lane.b32.xlu0 %v805, 113
  %v996 = vpop.permute.xlu0 %995
  %v997 = vsel %vm475, %v994, %v996
  %v998 = vsel %vm475, %v992, %v994
  %v999 = vsel %vm475, %v990, %v992
  %v1000 = vsel %vm475, %v996, %v990
  %v1001 = vld [vmem:[%s480] sm:$0xff]
  %v1002 = vld [vmem:[%s480 + $0x8] sm:$0xff]
  %v1005 = vcombine.high %v1001, %v1001
  %v1006 = vcombine.high %v1002, %v1002
  %v1009 = vmul.f32 %v999, %v1001
  %v1010 = vmul.f32 %v998, %v1005
  %v1011 = vmul.f32 %v997, %v1002
  %v1012 = vmul.f32 %v1000, %v1006
  %v1013 = vadd.f32 %v985, %v1009
  %v1014 = vadd.f32 %v986, %v1010
  %v1015 = vadd.f32 %v987, %v1011
  %v1016 = vadd.f32 %v988, %v1012
  %v1021 = vrot.slane %v708, 4
  %v1022 = vrot.slane %v710, 4
  %v1023 = vrot.slane %v803, 4
  %v1024 = vrot.slane %v805, 4
  %1029 = vrot.lane.b32.xlu0 %v1021, 112
  %v1030 = vpop.permute.xlu0 %1029
  %1031 = vrot.lane.b32.xlu0 %v1022, 112
  %v1032 = vpop.permute.xlu0 %1031
  %1033 = vrot.lane.b32.xlu0 %v1023, 112
  %v1034 = vpop.permute.xlu0 %1033
  %1035 = vrot.lane.b32.xlu0 %v1024, 112
  %v1036 = vpop.permute.xlu0 %1035
  %v1037 = vsel %vm517, %v1034, %v1036
  %v1038 = vsel %vm517, %v1032, %v1034
  %v1039 = vsel %vm517, %v1030, %v1032
  %v1040 = vsel %vm517, %v1036, %v1030
  %v1041 = vld [vmem:[%s522] sm:$0xff]
  %v1042 = vld [vmem:[%s522 + $0x8] sm:$0xff]
  %v1045 = vcombine.high %v1041, %v1041
  %v1046 = vcombine.high %v1042, %v1042
  %v1049 = vmul.f32 %v1039, %v1041
  %v1050 = vmul.f32 %v1038, %v1045
  %v1051 = vmul.f32 %v1037, %v1042
  %v1052 = vmul.f32 %v1040, %v1046
  %v1053 = vadd.f32 %v1013, %v1049
  %v1054 = vadd.f32 %v1014, %v1050
  %v1055 = vadd.f32 %v1015, %v1051
  %v1056 = vadd.f32 %v1016, %v1052
  %1057 = vrot.lane.b32.xlu0 %v714, 111
  %v1058 = vpop.permute.xlu0 %1057
  %1059 = vrot.lane.b32.xlu0 %v716, 111
  %v1060 = vpop.permute.xlu0 %1059
  %1061 = vrot.lane.b32.xlu0 %v809, 111
  %v1062 = vpop.permute.xlu0 %1061
  %1063 = vrot.lane.b32.xlu0 %v811, 111
  %v1064 = vpop.permute.xlu0 %1063
  %v1065 = vsel %vm547, %v1062, %v1064
  %v1066 = vsel %vm547, %v1060, %v1062
  %v1067 = vsel %vm547, %v1058, %v1060
  %v1068 = vsel %vm547, %v1064, %v1058
  %v1069 = vld [vmem:[%s552] sm:$0xff]
  %v1070 = vld [vmem:[%s552 + $0x8] sm:$0xff]
  %v1073 = vcombine.high %v1069, %v1069
  %v1074 = vcombine.high %v1070, %v1070
  %v1077 = vmul.f32 %v1067, %v1069
  %v1078 = vmul.f32 %v1066, %v1073
  %v1079 = vmul.f32 %v1065, %v1070
  %v1080 = vmul.f32 %v1068, %v1074
  %v1081 = vadd.f32 %v1053, %v1077
  %v1082 = vadd.f32 %v1054, %v1078
  %v1083 = vadd.f32 %v1055, %v1079
  %v1084 = vadd.f32 %v1056, %v1080
  %v1085 = vmax.f32 %v1081, 0.0
  %v1086 = vmax.f32 %v1082, 0.0
  %v1087 = vmax.f32 %v1083, 0.0
  %v1088 = vmax.f32 %v1084, 0.0
  %v1089 = vsel %vm573, %v1085, 0.0
  %v1090 = vsel %vm573, %v1086, 0.0
  %v1091 = vsel %vm573, %v1087, 0.0
  %v1092 = vsel %vm573, %v1088, 0.0
  %1093 = vst [vmem:[#allocation2 + $0x40] sm:$0xff] %v1089
  %1094 = vst [vmem:[#allocation2 + $0x48] sm:$0xff] %v1090
  %1095 = vst [vmem:[#allocation2 + $0x50] sm:$0xff] %v1091
  %1096 = vst [vmem:[#allocation2 + $0x58] sm:$0xff] %v1092
  %s1097 = scalar_lea.vmem %s1, 80
  %v1098 = vld [vmem:[%s1097] sm:$0xff]
  %v1099 = vld [vmem:[%s1097 + $0x8] sm:$0xff]
  %v1100 = vld [vmem:[%s1097 + $0x10] sm:$0xff]
  %v1101 = vld [vmem:[%s1097 + $0x18] sm:$0xff]
  %v1102 = vld [vmem:[%s1097 + $0x20] sm:$0xf]
  %v1103 = vld [vmem:[#allocation2] sm:$0xff]
  %v1104 = vld [vmem:[#allocation2 + $0x8] sm:$0xff]
  %v1105 = vld [vmem:[#allocation2 + $0x10] sm:$0xff]
  %v1106 = vld [vmem:[#allocation2 + $0x18] sm:$0xff]
  %v1107 = vld [vmem:[#allocation2 + $0x20] sm:$0xff]
  %v1108 = vld [vmem:[#allocation2 + $0x28] sm:$0xff]
  %v1109 = vld [vmem:[#allocation2 + $0x30] sm:$0xff]
  %v1110 = vld [vmem:[#allocation2 + $0x38] sm:$0xff]
  %v1111 = vld [vmem:[#allocation2 + $0x40] sm:$0xff]
  %v1112 = vld [vmem:[#allocation2 + $0x48] sm:$0xff]
  %v1113 = vld [vmem:[#allocation2 + $0x50] sm:$0xff]
  %v1114 = vld [vmem:[#allocation2 + $0x58] sm:$0xff]
  %v1115 = vld [vmem:[#allocation2 + $0x60] sm:$0xff]
  %v1116 = vld [vmem:[#allocation2 + $0x68] sm:$0xff]
  %v1117 = vld [vmem:[#allocation2 + $0x70] sm:$0xff]
  %v1118 = vld [vmem:[#allocation2 + $0x78] sm:$0xff]
  %v1119 = vld [vmem:[#allocation2 + $0x80] sm:$0xff]
  %v1120 = vld [vmem:[#allocation2 + $0x88] sm:$0xff]
  %v1121 = vld [vmem:[#allocation2 + $0x90] sm:$0xff]
  %v1122 = vld [vmem:[#allocation2 + $0x98] sm:$0xff]
  %v1124 = vsel %vm74, %v1098, 0
  %v1127 = vsel %vm74, %v1099, 0
  %v1130 = vsel %vm74, %v1100, 0
  %v1133 = vsel %vm74, %v1101, 0
  %v1136 = vsel %vm74, %v1102, 0
  %1138 = vmatprep.subr.mxu0 %v1104
  %1139 = vmatpush1.msra.mxu0 %v1103
  %1140 = vmatprep.subr.mxu0 %v1108
  %1141 = vmatpush1.msra.mxu0 %v1107
  %1142 = vmatprep.subr.mxu0 %v1112
  %1143 = vmatpush1.msra.mxu0 %v1111
  %1144 = vmatprep.subr.mxu0 %v1116
  %1145 = vmatpush1.msra.mxu0 %v1115
  %1146 = vmatprep.subr.mxu0 %v1120
  %1147 = vmatpush1.msra.mxu0 %v1119
  %1148 = vmatprep.subr.mxu0 0.0
  %1149 = vmatpush1.msra.mxu0 0.0
  %1150 = vmatprep.subr.mxu0 0.0
  %1151 = vmatpush1.msra.mxu0 0.0
  %1152 = vmatprep.subr.mxu0 0.0
  %1153 = vmatpush1.msra.mxu0 0.0
  %1154 = vmatprep.subr.mxu0 0.0
  %1155 = vmatpush1.msra.mxu0 0.0
  %1156 = vmatprep.subr.mxu0 0.0
  %1157 = vmatpush1.msra.mxu0 0.0
  %1158 = vmatprep.subr.mxu0 0.0
  %1159 = vmatpush1.msra.mxu0 0.0
  %1160 = vmatprep.subr.mxu0 0.0
  %1161 = vmatpush1.msra.mxu0 0.0
  %1162 = vmatprep.subr.mxu0 0.0
  %1163 = vmatpush1.msra.mxu0 0.0
  %1164 = vmatprep.subr.mxu0 0.0
  %1165 = vmatpush1.msra.mxu0 0.0
  %1166 = vmatprep.subr.mxu0 0.0
  %1167 = vmatpush1.msra.mxu0 0.0
  %1168 = vmatprep.subr.mxu0 0.0
  %1169 = vmatpush1.msra.mxu0 0.0
  %1170 = vmatprep.subr.mxu0 0.0
  %1171 = vmatpush1.msra.mxu0 0.0
  %1172 = vmatprep.subr.mxu0 0.0
  %1173 = vmatpush1.msra.mxu0 0.0
  %1174 = vmatprep.subr.mxu0 0.0
  %1175 = vmatpush1.msra.mxu0 0.0
  %1176 = vmatprep.subr.mxu0 0.0
  %1177 = vmatpush1.msra.mxu0 0.0
  %1178 = vmatprep.subr.mxu0 0.0
  %1179 = vmatpush1.msra.mxu0 0.0
  %1180 = vmatprep.subr.mxu0 0.0
  %1181 = vmatpush1.msra.mxu0 0.0
  %1182 = vmatprep.subr.mxu0 0.0
  %1183 = vmatpush1.msra.mxu0 0.0
  %1184 = vmatprep.subr.mxu0 0.0
  %1185 = vmatpush1.msra.mxu0 0.0
  %1186 = vmatprep.subr.mxu0 0.0
  %1187 = vmatpush1.msra.mxu0 0.0
  %1188 = vmatprep.subr.mxu0 0.0
  %1189 = vmatpush1.msra.mxu0 0.0
  %1190 = vmatprep.subr.mxu0 0.0
  %1191 = vmatpush1.msra.mxu0 0.0
  %1192 = vmatprep.subr.mxu0 0.0
  %1193 = vmatpush1.msra.mxu0 0.0
  %1194 = vmatprep.subr.mxu0 0.0
  %1195 = vmatpush1.msra.mxu0 0.0
  %1196 = vmatprep.subr.mxu0 0.0
  %1197 = vmatpush1.msra.mxu0 0.0
  %1198 = vmatprep.subr.mxu0 0.0
  %1199 = vmatpush1.msra.mxu0 0.0
  %1200 = vmatprep.subr.mxu0 0.0
  %1201 = vmatpush1.msra.mxu0 0.0
  %1202 = vmatprep.mubr.f32.mxu0 0.0
  %1203 = vmatmul.mubr.f32.gmra.mrb[0].mxu0 %v1124
  %v1204 = vpop.f32.mrb[0].mxu0
  %v1205 = vadd.f32 0.0, %v1204
  %v1206 = vpop.f32.mrb[0].mxu0
  %v1207 = vadd.f32 0.0, %v1206
  %1208 = vmatprep.mubr.f32.mxu0 0.0
  %1209 = vmatmul.mubr.f32.gmra.mrb[0].mxu0 %v1127
  %v1210 = vpop.f32.mrb[0].mxu0
  %v1211 = vadd.f32 0.0, %v1210
  %v1212 = vpop.f32.mrb[0].mxu0
  %v1213 = vadd.f32 0.0, %v1212
  %1214 = vmatprep.mubr.f32.mxu0 0.0
  %1215 = vmatmul.mubr.f32.gmra.mrb[0].mxu0 %v1130
  %v1216 = vpop.f32.mrb[0].mxu0
  %v1217 = vadd.f32 0.0, %v1216
  %v1218 = vpop.f32.mrb[0].mxu0
  %v1219 = vadd.f32 0.0, %v1218
  %1220 = vmatprep.mubr.f32.mxu0 0.0
  %1221 = vmatmul.mubr.f32.gmra.mrb[0].mxu0 %v1133
  %v1222 = vpop.f32.mrb[0].mxu0
  %v1223 = vadd.f32 0.0, %v1222
  %v1224 = vpop.f32.mrb[0].mxu0
  %v1225 = vadd.f32 0.0, %v1224
  %1226 = vmatprep.mubr.f32.mxu0 0.0
  %1227 = vmatmul.mubr.f32.gmra.mrb[0].mxu0 %v1136
  %v1228 = vpop.f32.mrb[0].mxu0
  %v1229 = vadd.f32 0.0, %v1228
  %v1230 = vpop.f32.mrb[0].mxu0
  %v1231 = vadd.f32 0.0, %v1230
  %1232 = vdwg.mxu0
  %1233 = vmatprep.subr.mxu0 %v1106
  %1234 = vmatpush1.msra.mxu0 %v1105
  %1235 = vmatprep.subr.mxu0 %v1110
  %1236 = vmatpush1.msra.mxu0 %v1109
  %1237 = vmatprep.subr.mxu0 %v1114
  %1238 = vmatpush1.msra.mxu0 %v1113
  %1239 = vmatprep.subr.mxu0 %v1118
  %1240 = vmatpush1.msra.mxu0 %v1117
  %1241 = vmatprep.subr.mxu0 %v1122
  %1242 = vmatpush1.msra.mxu0 %v1121
  %1243 = vmatprep.subr.mxu0 0.0
  %1244 = vmatpush1.msra.mxu0 0.0
  %1245 = vmatprep.subr.mxu0 0.0
  %1246 = vmatpush1.msra.mxu0 0.0
  %1247 = vmatprep.subr.mxu0 0.0
  %1248 = vmatpush1.msra.mxu0 0.0
  %1249 = vmatprep.subr.mxu0 0.0
  %1250 = vmatpush1.msra.mxu0 0.0
  %1251 = vmatprep.subr.mxu0 0.0
  %1252 = vmatpush1.msra.mxu0 0.0
  %1253 = vmatprep.subr.mxu0 0.0
  %1254 = vmatpush1.msra.mxu0 0.0
  %1255 = vmatprep.subr.mxu0 0.0
  %1256 = vmatpush1.msra.mxu0 0.0
  %1257 = vmatprep.subr.mxu0 0.0
  %1258 = vmatpush1.msra.mxu0 0.0
  %1259 = vmatprep.subr.mxu0 0.0
  %1260 = vmatpush1.msra.mxu0 0.0
  %1261 = vmatprep.subr.mxu0 0.0
  %1262 = vmatpush1.msra.mxu0 0.0
  %1263 = vmatprep.subr.mxu0 0.0
  %1264 = vmatpush1.msra.mxu0 0.0
  %1265 = vmatprep.subr.mxu0 0.0
  %1266 = vmatpush1.msra.mxu0 0.0
  %1267 = vmatprep.subr.mxu0 0.0
  %1268 = vmatpush1.msra.mxu0 0.0
  %1269 = vmatprep.subr.mxu0 0.0
  %1270 = vmatpush1.msra.mxu0 0.0
  %1271 = vmatprep.subr.mxu0 0.0
  %1272 = vmatpush1.msra.mxu0 0.0
  %1273 = vmatprep.subr.mxu0 0.0
  %1274 = vmatpush1.msra.mxu0 0.0
  %1275 = vmatprep.subr.mxu0 0.0
  %1276 = vmatpush1.msra.mxu0 0.0
  %1277 = vmatprep.subr.mxu0 0.0
  %1278 = vmatpush1.msra.mxu0 0.0
  %1279 = vmatprep.subr.mxu0 0.0
  %1280 = vmatpush1.msra.mxu0 0.0
  %1281 = vmatprep.subr.mxu0 0.0
  %1282 = vmatpush1.msra.mxu0 0.0
  %1283 = vmatprep.subr.mxu0 0.0
  %1284 = vmatpush1.msra.mxu0 0.0
  %1285 = vmatprep.subr.mxu0 0.0
  %1286 = vmatpush1.msra.mxu0 0.0
  %1287 = vmatprep.subr.mxu0 0.0
  %1288 = vmatpush1.msra.mxu0 0.0
  %1289 = vmatprep.subr.mxu0 0.0
  %1290 = vmatpush1.msra.mxu0 0.0
  %1291 = vmatprep.subr.mxu0 0.0
  %1292 = vmatpush1.msra.mxu0 0.0
  %1293 = vmatprep.subr.mxu0 0.0
  %1294 = vmatpush1.msra.mxu0 0.0
  %1295 = vmatprep.subr.mxu0 0.0
  %1296 = vmatpush1.msra.mxu0 0.0
  %1297 = vmatprep.mubr.f32.mxu0 0.0
  %1298 = vmatmul.mubr.f32.gmra.mrb[0].mxu0 %v1124
  %v1299 = vpop.f32.mrb[0].mxu0
  %v1300 = vadd.f32 0.0, %v1299
  %v1301 = vpop.f32.mrb[0].mxu0
  %v1302 = vadd.f32 0.0, %v1301
  %1303 = vmatprep.mubr.f32.mxu0 0.0
  %1304 = vmatmul.mubr.f32.gmra.mrb[0].mxu0 %v1127
  %v1305 = vpop.f32.mrb[0].mxu0
  %v1306 = vadd.f32 0.0, %v1305
  %v1307 = vpop.f32.mrb[0].mxu0
  %v1308 = vadd.f32 0.0, %v1307
  %1309 = vmatprep.mubr.f32.mxu0 0.0
  %1310 = vmatmul.mubr.f32.gmra.mrb[0].mxu0 %v1130
  %v1311 = vpop.f32.mrb[0].mxu0
  %v1312 = vadd.f32 0.0, %v1311
  %v1313 = vpop.f32.mrb[0].mxu0
  %v1314 = vadd.f32 0.0, %v1313
  %1315 = vmatprep.mubr.f32.mxu0 0.0
  %1316 = vmatmul.mubr.f32.gmra.mrb[0].mxu0 %v1133
  %v1317 = vpop.f32.mrb[0].mxu0
  %v1318 = vadd.f32 0.0, %v1317
  %v1319 = vpop.f32.mrb[0].mxu0
  %v1320 = vadd.f32 0.0, %v1319
  %1321 = vmatprep.mubr.f32.mxu0 0.0
  %1322 = vmatmul.mubr.f32.gmra.mrb[0].mxu0 %v1136
  %v1323 = vpop.f32.mrb[0].mxu0
  %v1324 = vadd.f32 0.0, %v1323
  %v1325 = vpop.f32.mrb[0].mxu0
  %v1326 = vadd.f32 0.0, %v1325
  %1327 = vdwg.mxu0
  %1328 = vrot.lane.b32.xlu0 %v1205, 17
  %v1329 = vpop.permute.xlu0 %1328
  %1330 = vrot.lane.b32.xlu0 %v1207, 17
  %v1331 = vpop.permute.xlu0 %1330
  %1332 = vrot.lane.b32.xlu0 %v1300, 17
  %v1333 = vpop.permute.xlu0 %1332
  %1334 = vrot.lane.b32.xlu0 %v1302, 17
  %v1335 = vpop.permute.xlu0 %1334
  %v1336 = vsel %vm290, %v1333, %v1335
  %v1337 = vsel %vm290, %v1331, %v1333
  %v1338 = vsel %vm290, %v1329, %v1331
  %v1339 = vsel %vm290, %v1335, %v1329
  %v1340 = vld [vmem:[%s3] sm:$0xff]
  %v1341 = vld [vmem:[%s3 + $0x8] sm:$0xff]
  %v1344 = vcombine.high %v1340, %v1340
  %v1345 = vcombine.high %v1341, %v1341
  %v1348 = vmul.f32 %v1339, %v1340
  %v1349 = vmul.f32 %v1338, %v1344
  %v1350 = vmul.f32 %v1337, %v1341
  %v1351 = vmul.f32 %v1336, %v1345
  %v1352 = vadd.f32 %v1217, %v1348
  %v1353 = vadd.f32 %v1219, %v1349
  %v1354 = vadd.f32 %v1312, %v1350
  %v1355 = vadd.f32 %v1314, %v1351
  %v1360 = vrot.slane %v1205, 4
  %v1361 = vrot.slane %v1207, 4
  %v1362 = vrot.slane %v1300, 4
  %v1363 = vrot.slane %v1302, 4
  %1368 = vrot.lane.b32.xlu0 %v1360, 16
  %v1369 = vpop.permute.xlu0 %1368
  %1370 = vrot.lane.b32.xlu0 %v1361, 16
  %v1371 = vpop.permute.xlu0 %1370
  %1372 = vrot.lane.b32.xlu0 %v1362, 16
  %v1373 = vpop.permute.xlu0 %1372
  %1374 = vrot.lane.b32.xlu0 %v1363, 16
  %v1375 = vpop.permute.xlu0 %1374
  %v1376 = vsel %vm331, %v1373, %v1375
  %v1377 = vsel %vm331, %v1371, %v1373
  %v1378 = vsel %vm331, %v1369, %v1371
  %v1379 = vsel %vm331, %v1375, %v1369
  %v1380 = vld [vmem:[%s336] sm:$0xff]
  %v1381 = vld [vmem:[%s336 + $0x8] sm:$0xff]
  %v1384 = vcombine.high %v1380, %v1380
  %v1385 = vcombine.high %v1381, %v1381
  %v1388 = vmul.f32 %v1379, %v1380
  %v1389 = vmul.f32 %v1378, %v1384
  %v1390 = vmul.f32 %v1377, %v1381
  %v1391 = vmul.f32 %v1376, %v1385
  %v1392 = vadd.f32 %v1352, %v1388
  %v1393 = vadd.f32 %v1353, %v1389
  %v1394 = vadd.f32 %v1354, %v1390
  %v1395 = vadd.f32 %v1355, %v1391
  %1396 = vrot.lane.b32.xlu0 %v1211, 15
  %v1397 = vpop.permute.xlu0 %1396
  %1398 = vrot.lane.b32.xlu0 %v1213, 15
  %v1399 = vpop.permute.xlu0 %1398
  %1400 = vrot.lane.b32.xlu0 %v1306, 15
  %v1401 = vpop.permute.xlu0 %1400
  %1402 = vrot.lane.b32.xlu0 %v1308, 15
  %v1403 = vpop.permute.xlu0 %1402
  %v1404 = vsel %vm361, %v1401, %v1403
  %v1405 = vsel %vm361, %v1399, %v1401
  %v1406 = vsel %vm361, %v1397, %v1399
  %v1407 = vsel %vm361, %v1403, %v1397
  %v1408 = vld [vmem:[%s366] sm:$0xff]
  %v1409 = vld [vmem:[%s366 + $0x8] sm:$0xff]
  %v1412 = vcombine.high %v1408, %v1408
  %v1413 = vcombine.high %v1409, %v1409
  %v1416 = vmul.f32 %v1407, %v1408
  %v1417 = vmul.f32 %v1406, %v1412
  %v1418 = vmul.f32 %v1405, %v1409
  %v1419 = vmul.f32 %v1404, %v1413
  %v1420 = vadd.f32 %v1392, %v1416
  %v1421 = vadd.f32 %v1393, %v1417
  %v1422 = vadd.f32 %v1394, %v1418
  %v1423 = vadd.f32 %v1395, %v1419
  %v1428 = vrot.slane %v1211, 4
  %v1429 = vrot.slane %v1213, 4
  %v1430 = vrot.slane %v1306, 4
  %v1431 = vrot.slane %v1308, 4
  %1436 = vrot.lane.b32.xlu0 %v1428, 1
  %v1437 = vpop.permute.xlu0 %1436
  %1438 = vrot.lane.b32.xlu0 %v1429, 1
  %v1439 = vpop.permute.xlu0 %1438
  %1440 = vrot.lane.b32.xlu0 %v1430, 1
  %v1441 = vpop.permute.xlu0 %1440
  %1442 = vrot.lane.b32.xlu0 %v1431, 1
  %v1443 = vpop.permute.xlu0 %1442
  %v1444 = vsel %vm403, %v1441, %v1443
  %v1445 = vsel %vm403, %v1439, %v1441
  %v1446 = vsel %vm403, %v1437, %v1439
  %v1447 = vsel %vm403, %v1443, %v1437
  %v1448 = vld [vmem:[%s408] sm:$0xff]
  %v1449 = vld [vmem:[%s408 + $0x8] sm:$0xff]
  %v1452 = vcombine.high %v1448, %v1448
  %v1453 = vcombine.high %v1449, %v1449
  %v1456 = vmul.f32 %v1447, %v1448
  %v1457 = vmul.f32 %v1446, %v1452
  %v1458 = vmul.f32 %v1445, %v1449
  %v1459 = vmul.f32 %v1444, %v1453
  %v1460 = vadd.f32 %v1420, %v1456
  %v1461 = vadd.f32 %v1421, %v1457
  %v1462 = vadd.f32 %v1422, %v1458
  %v1463 = vadd.f32 %v1423, %v1459
  %v1468 = vrot.slane %v1217, 4
  %v1469 = vrot.slane %v1219, 4
  %v1470 = vrot.slane %v1312, 4
  %v1471 = vrot.slane %v1314, 4
  %1476 = vrot.lane.b32.xlu0 %v1468, 127
  %v1477 = vpop.permute.xlu0 %1476
  %1478 = vrot.lane.b32.xlu0 %v1469, 127
  %v1479 = vpop.permute.xlu0 %1478
  %1480 = vrot.lane.b32.xlu0 %v1470, 127
  %v1481 = vpop.permute.xlu0 %1480
  %1482 = vrot.lane.b32.xlu0 %v1471, 127
  %v1483 = vpop.permute.xlu0 %1482
  %v1484 = vsel %vm445, %v1481, %v1483
  %v1485 = vsel %vm445, %v1479, %v1481
  %v1486 = vsel %vm445, %v1477, %v1479
  %v1487 = vsel %vm445, %v1483, %v1477
  %v1488 = vld [vmem:[%s450] sm:$0xff]
  %v1489 = vld [vmem:[%s450 + $0x8] sm:$0xff]
  %v1492 = vcombine.high %v1488, %v1488
  %v1493 = vcombine.high %v1489, %v1489
  %v1496 = vmul.f32 %v1486, %v1488
  %v1497 = vmul.f32 %v1485, %v1492
  %v1498 = vmul.f32 %v1484, %v1489
  %v1499 = vmul.f32 %v1487, %v1493
  %v1500 = vadd.f32 %v1460, %v1496
  %v1501 = vadd.f32 %v1461, %v1497
  %v1502 = vadd.f32 %v1462, %v1498
  %v1503 = vadd.f32 %v1463, %v1499
  %1504 = vrot.lane.b32.xlu0 %v1223, 113
  %v1505 = vpop.permute.xlu0 %1504
  %1506 = vrot.lane.b32.xlu0 %v1225, 113
  %v1507 = vpop.permute.xlu0 %1506
  %1508 = vrot.lane.b32.xlu0 %v1318, 113
  %v1509 = vpop.permute.xlu0 %1508
  %1510 = vrot.lane.b32.xlu0 %v1320, 113
  %v1511 = vpop.permute.xlu0 %1510
  %v1512 = vsel %vm475, %v1509, %v1511
  %v1513 = vsel %vm475, %v1507, %v1509
  %v1514 = vsel %vm475, %v1505, %v1507
  %v1515 = vsel %vm475, %v1511, %v1505
  %v1516 = vld [vmem:[%s480] sm:$0xff]
  %v1517 = vld [vmem:[%s480 + $0x8] sm:$0xff]
  %v1520 = vcombine.high %v1516, %v1516
  %v1521 = vcombine.high %v1517, %v1517
  %v1524 = vmul.f32 %v1514, %v1516
  %v1525 = vmul.f32 %v1513, %v1520
  %v1526 = vmul.f32 %v1512, %v1517
  %v1527 = vmul.f32 %v1515, %v1521
  %v1528 = vadd.f32 %v1500, %v1524
  %v1529 = vadd.f32 %v1501, %v1525
  %v1530 = vadd.f32 %v1502, %v1526
  %v1531 = vadd.f32 %v1503, %v1527
  %v1536 = vrot.slane %v1223, 4
  %v1537 = vrot.slane %v1225, 4
  %v1538 = vrot.slane %v1318, 4
  %v1539 = vrot.slane %v1320, 4
  %1544 = vrot.lane.b32.xlu0 %v1536, 112
  %v1545 = vpop.permute.xlu0 %1544
  %1546 = vrot.lane.b32.xlu0 %v1537, 112
  %v1547 = vpop.permute.xlu0 %1546
  %1548 = vrot.lane.b32.xlu0 %v1538, 112
  %v1549 = vpop.permute.xlu0 %1548
  %1550 = vrot.lane.b32.xlu0 %v1539, 112
  %v1551 = vpop.permute.xlu0 %1550
  %v1552 = vsel %vm517, %v1549, %v1551
  %v1553 = vsel %vm517, %v1547, %v1549
  %v1554 = vsel %vm517, %v1545, %v1547
  %v1555 = vsel %vm517, %v1551, %v1545
  %v1556 = vld [vmem:[%s522] sm:$0xff]
  %v1557 = vld [vmem:[%s522 + $0x8] sm:$0xff]
  %v1560 = vcombine.high %v1556, %v1556
  %v1561 = vcombine.high %v1557, %v1557
  %v1564 = vmul.f32 %v1554, %v1556
  %v1565 = vmul.f32 %v1553, %v1560
  %v1566 = vmul.f32 %v1552, %v1557
  %v1567 = vmul.f32 %v1555, %v1561
  %v1568 = vadd.f32 %v1528, %v1564
  %v1569 = vadd.f32 %v1529, %v1565
  %v1570 = vadd.f32 %v1530, %v1566
  %v1571 = vadd.f32 %v1531, %v1567
  %1572 = vrot.lane.b32.xlu0 %v1229, 111
  %v1573 = vpop.permute.xlu0 %1572
  %1574 = vrot.lane.b32.xlu0 %v1231, 111
  %v1575 = vpop.permute.xlu0 %1574
  %1576 = vrot.lane.b32.xlu0 %v1324, 111
  %v1577 = vpop.permute.xlu0 %1576
  %1578 = vrot.lane.b32.xlu0 %v1326, 111
  %v1579 = vpop.permute.xlu0 %1578
  %v1580 = vsel %vm547, %v1577, %v1579
  %v1581 = vsel %vm547, %v1575, %v1577
  %v1582 = vsel %vm547, %v1573, %v1575
  %v1583 = vsel %vm547, %v1579, %v1573
  %v1584 = vld [vmem:[%s552] sm:$0xff]
  %v1585 = vld [vmem:[%s552 + $0x8] sm:$0xff]
  %v1588 = vcombine.high %v1584, %v1584
  %v1589 = vcombine.high %v1585, %v1585
  %v1592 = vmul.f32 %v1582, %v1584
  %v1593 = vmul.f32 %v1581, %v1588
  %v1594 = vmul.f32 %v1580, %v1585
  %v1595 = vmul.f32 %v1583, %v1589
  %v1596 = vadd.f32 %v1568, %v1592
  %v1597 = vadd.f32 %v1569, %v1593
  %v1598 = vadd.f32 %v1570, %v1594
  %v1599 = vadd.f32 %v1571, %v1595
  %v1600 = vmax.f32 %v1596, 0.0
  %v1601 = vmax.f32 %v1597, 0.0
  %v1602 = vmax.f32 %v1598, 0.0
  %v1603 = vmax.f32 %v1599, 0.0
  %v1604 = vsel %vm573, %v1600, 0.0
  %v1605 = vsel %vm573, %v1601, 0.0
  %v1606 = vsel %vm573, %v1602, 0.0
  %v1607 = vsel %vm573, %v1603, 0.0
  %1608 = vst [vmem:[#allocation2 + $0x60] sm:$0xff] %v1604
  %1609 = vst [vmem:[#allocation2 + $0x68] sm:$0xff] %v1605
  %1610 = vst [vmem:[#allocation2 + $0x70] sm:$0xff] %v1606
  %1611 = vst [vmem:[#allocation2 + $0x78] sm:$0xff] %v1607
  %v1612 = vld [vmem:[%s2] sm:$0xff]
  %v1613 = vld [vmem:[#allocation2] sm:$0xff]
  %v1614 = vld [vmem:[#allocation2 + $0x8] sm:$0xff]
  %v1615 = vld [vmem:[#allocation2 + $0x10] sm:$0xff]
  %v1616 = vld [vmem:[#allocation2 + $0x18] sm:$0xff]
  %v1617 = vld [vmem:[#allocation2 + $0x20] sm:$0xff]
  %v1618 = vld [vmem:[#allocation2 + $0x28] sm:$0xff]
  %v1619 = vld [vmem:[#allocation2 + $0x30] sm:$0xff]
  %v1620 = vld [vmem:[#allocation2 + $0x38] sm:$0xff]
  %v1621 = vld [vmem:[#allocation2 + $0x40] sm:$0xff]
  %v1622 = vld [vmem:[#allocation2 + $0x48] sm:$0xff]
  %v1623 = vld [vmem:[#allocation2 + $0x50] sm:$0xff]
  %v1624 = vld [vmem:[#allocation2 + $0x58] sm:$0xff]
  %v1625 = vld [vmem:[#allocation2 + $0x60] sm:$0xff]
  %v1626 = vld [vmem:[#allocation2 + $0x68] sm:$0xff]
  %v1627 = vld [vmem:[#allocation2 + $0x70] sm:$0xff]
  %v1628 = vld [vmem:[#allocation2 + $0x78] sm:$0xff]
  %v1629 = vld [vmem:[#allocation2 + $0x80] sm:$0xff]
  %v1630 = vld [vmem:[#allocation2 + $0x88] sm:$0xff]
  %v1631 = vld [vmem:[#allocation2 + $0x90] sm:$0xff]
  %v1632 = vld [vmem:[#allocation2 + $0x98] sm:$0xff]
  %v1634 = vsel %vm74, %v1612, 0
  %1636 = vmatprep.subr.mxu0 %v1614
  %1637 = vmatpush1.msra.mxu0 %v1613
  %1638 = vmatprep.subr.mxu0 %v1618
  %1639 = vmatpush1.msra.mxu0 %v1617
  %1640 = vmatprep.subr.mxu0 %v1622
  %1641 = vmatpush1.msra.mxu0 %v1621
  %1642 = vmatprep.subr.mxu0 %v1626
  %1643 = vmatpush1.msra.mxu0 %v1625
  %1644 = vmatprep.subr.mxu0 %v1630
  %1645 = vmatpush1.msra.mxu0 %v1629
  %1646 = vmatprep.subr.mxu0 0.0
  %1647 = vmatpush1.msra.mxu0 0.0
  %1648 = vmatprep.subr.mxu0 0.0
  %1649 = vmatpush1.msra.mxu0 0.0
  %1650 = vmatprep.subr.mxu0 0.0
  %1651 = vmatpush1.msra.mxu0 0.0
  %1652 = vmatprep.subr.mxu0 0.0
  %1653 = vmatpush1.msra.mxu0 0.0
  %1654 = vmatprep.subr.mxu0 0.0
  %1655 = vmatpush1.msra.mxu0 0.0
  %1656 = vmatprep.subr.mxu0 0.0
  %1657 = vmatpush1.msra.mxu0 0.0
  %1658 = vmatprep.subr.mxu0 0.0
  %1659 = vmatpush1.msra.mxu0 0.0
  %1660 = vmatprep.subr.mxu0 0.0
  %1661 = vmatpush1.msra.mxu0 0.0
  %1662 = vmatprep.subr.mxu0 0.0
  %1663 = vmatpush1.msra.mxu0 0.0
  %1664 = vmatprep.subr.mxu0 0.0
  %1665 = vmatpush1.msra.mxu0 0.0
  %1666 = vmatprep.subr.mxu0 0.0
  %1667 = vmatpush1.msra.mxu0 0.0
  %1668 = vmatprep.subr.mxu0 0.0
  %1669 = vmatpush1.msra.mxu0 0.0
  %1670 = vmatprep.subr.mxu0 0.0
  %1671 = vmatpush1.msra.mxu0 0.0
  %1672 = vmatprep.subr.mxu0 0.0
  %1673 = vmatpush1.msra.mxu0 0.0
  %1674 = vmatprep.subr.mxu0 0.0
  %1675 = vmatpush1.msra.mxu0 0.0
  %1676 = vmatprep.subr.mxu0 0.0
  %1677 = vmatpush1.msra.mxu0 0.0
  %1678 = vmatprep.subr.mxu0 0.0
  %1679 = vmatpush1.msra.mxu0 0.0
  %1680 = vmatprep.subr.mxu0 0.0
  %1681 = vmatpush1.msra.mxu0 0.0
  %1682 = vmatprep.subr.mxu0 0.0
  %1683 = vmatpush1.msra.mxu0 0.0
  %1684 = vmatprep.subr.mxu0 0.0
  %1685 = vmatpush1.msra.mxu0 0.0
  %1686 = vmatprep.subr.mxu0 0.0
  %1687 = vmatpush1.msra.mxu0 0.0
  %1688 = vmatprep.subr.mxu0 0.0
  %1689 = vmatpush1.msra.mxu0 0.0
  %1690 = vmatprep.subr.mxu0 0.0
  %1691 = vmatpush1.msra.mxu0 0.0
  %1692 = vmatprep.subr.mxu0 0.0
  %1693 = vmatpush1.msra.mxu0 0.0
  %1694 = vmatprep.subr.mxu0 0.0
  %1695 = vmatpush1.msra.mxu0 0.0
  %1696 = vmatprep.subr.mxu0 0.0
  %1697 = vmatpush1.msra.mxu0 0.0
  %1698 = vmatprep.subr.mxu0 0.0
  %1699 = vmatpush1.msra.mxu0 0.0
  %1700 = vmatprep.mubr.f32.mxu0 0.0
  %1701 = vmatmul.mubr.f32.gmra.mrb[0].mxu0 %v1634
  %v1702 = vpop.f32.mrb[0].mxu0
  %v1703 = vadd.f32 0.0, %v1702
  %v1704 = vpop.f32.mrb[0].mxu0
  %v1705 = vadd.f32 0.0, %v1704
  %1706 = vdwg.mxu0
  %1707 = vmatprep.subr.mxu0 %v1616
  %1708 = vmatpush1.msra.mxu0 %v1615
  %1709 = vmatprep.subr.mxu0 %v1620
  %1710 = vmatpush1.msra.mxu0 %v1619
  %1711 = vmatprep.subr.mxu0 %v1624
  %1712 = vmatpush1.msra.mxu0 %v1623
  %1713 = vmatprep.subr.mxu0 %v1628
  %1714 = vmatpush1.msra.mxu0 %v1627
  %1715 = vmatprep.subr.mxu0 %v1632
  %1716 = vmatpush1.msra.mxu0 %v1631
  %1717 = vmatprep.subr.mxu0 0.0
  %1718 = vmatpush1.msra.mxu0 0.0
  %1719 = vmatprep.subr.mxu0 0.0
  %1720 = vmatpush1.msra.mxu0 0.0
  %1721 = vmatprep.subr.mxu0 0.0
  %1722 = vmatpush1.msra.mxu0 0.0
  %1723 = vmatprep.subr.mxu0 0.0
  %1724 = vmatpush1.msra.mxu0 0.0
  %1725 = vmatprep.subr.mxu0 0.0
  %1726 = vmatpush1.msra.mxu0 0.0
  %1727 = vmatprep.subr.mxu0 0.0
  %1728 = vmatpush1.msra.mxu0 0.0
  %1729 = vmatprep.subr.mxu0 0.0
  %1730 = vmatpush1.msra.mxu0 0.0
  %1731 = vmatprep.subr.mxu0 0.0
  %1732 = vmatpush1.msra.mxu0 0.0
  %1733 = vmatprep.subr.mxu0 0.0
  %1734 = vmatpush1.msra.mxu0 0.0
  %1735 = vmatprep.subr.mxu0 0.0
  %1736 = vmatpush1.msra.mxu0 0.0
  %1737 = vmatprep.subr.mxu0 0.0
  %1738 = vmatpush1.msra.mxu0 0.0
  %1739 = vmatprep.subr.mxu0 0.0
  %1740 = vmatpush1.msra.mxu0 0.0
  %1741 = vmatprep.subr.mxu0 0.0
  %1742 = vmatpush1.msra.mxu0 0.0
  %1743 = vmatprep.subr.mxu0 0.0
  %1744 = vmatpush1.msra.mxu0 0.0
  %1745 = vmatprep.subr.mxu0 0.0
  %1746 = vmatpush1.msra.mxu0 0.0
  %1747 = vmatprep.subr.mxu0 0.0
  %1748 = vmatpush1.msra.mxu0 0.0
  %1749 = vmatprep.subr.mxu0 0.0
  %1750 = vmatpush1.msra.mxu0 0.0
  %1751 = vmatprep.subr.mxu0 0.0
  %1752 = vmatpush1.msra.mxu0 0.0
  %1753 = vmatprep.subr.mxu0 0.0
  %1754 = vmatpush1.msra.mxu0 0.0
  %1755 = vmatprep.subr.mxu0 0.0
  %1756 = vmatpush1.msra.mxu0 0.0
  %1757 = vmatprep.subr.mxu0 0.0
  %1758 = vmatpush1.msra.mxu0 0.0
  %1759 = vmatprep.subr.mxu0 0.0
  %1760 = vmatpush1.msra.mxu0 0.0
  %1761 = vmatprep.subr.mxu0 0.0
  %1762 = vmatpush1.msra.mxu0 0.0
  %1763 = vmatprep.subr.mxu0 0.0
  %1764 = vmatpush1.msra.mxu0 0.0
  %1765 = vmatprep.subr.mxu0 0.0
  %1766 = vmatpush1.msra.mxu0 0.0
  %1767 = vmatprep.subr.mxu0 0.0
  %1768 = vmatpush1.msra.mxu0 0.0
  %1769 = vmatprep.subr.mxu0 0.0
  %1770 = vmatpush1.msra.mxu0 0.0
  %1771 = vmatprep.mubr.f32.mxu0 0.0
  %1772 = vmatmul.mubr.f32.gmra.mrb[0].mxu0 %v1634
  %v1773 = vpop.f32.mrb[0].mxu0
  %v1774 = vadd.f32 0.0, %v1773
  %v1775 = vpop.f32.mrb[0].mxu0
  %v1776 = vadd.f32 0.0, %v1775
  %1777 = vdwg.mxu0
  %v1778 = vld [vmem:[%s0] sm:$0xff]
  %v1779 = vld [vmem:[%s0 + $0x8] sm:$0xff]
  %v1780 = vadd.f32 %v1703, %v1778
  %v1781 = vadd.f32 %v1705, %v1779
  %1782 = vst [vmem:[%s4] sm:$0xff] %v1780
  %1783 = vst [vmem:[%s4 + $0x8] sm:$0xff] %v1781
  %v1784 = vld [vmem:[%s44] sm:$0xff]
  %v1785 = vld [vmem:[%s44 + $0x8] sm:$0xff]
  %v1786 = vadd.f32 %v1774, %v1784
  %v1787 = vadd.f32 %v1776, %v1785
  %s1788 = scalar_lea.vmem %s4, 16
  %1789 = vst [vmem:[%s1788] sm:$0xff] %v1786
  %1790 = vst [vmem:[%s1788 + $0x8] sm:$0xff] %v1787
  // Predicated region
  $region18: #{rdb_forward.1} parent=0 // pred_check
    _
  $region19: #{rdb_forward.1} parent=0 // pred_check_branch
    %1792 = sbr.rel (0) target = $region21
  $region20: #{rdb_forward.1} parent=0 // pred_region
    _
  $region21: #{rdb_forward.1} parent=0 // pred_fallthru
    _
  // Predicated region
  $region22: #{rdb_forward.1} parent=0 // pred_check
    _
  $region23: #{rdb_forward.1} parent=0 // pred_check_branch
    %1794 = sbr.rel (0) target = $region25
  $region24: #{rdb_forward.1} parent=0 // pred_region
    _
  $region25: #{rdb_forward.1} parent=0 // pred_fallthru
    _

</llo_original>
